<compile_context>
chip_gen: v5e
topology: v5e:2x2
jax: 0.10.0
libtpu: 0.0.40
codegen_flags: <defaults>
</compile_context>

<pallas_src>
import jax
import jax.numpy as jnp
import numpy as np
from jax import lax
from jax.experimental import pallas as pl
from jax.experimental.pallas import tpu as pltpu

# Model hyperparameters (small, consistent with the module's __init__ signature).
N_LAYERS = 2
N_HEAD = 2
D_K = 16
D_V = 16
D_MODEL = 32
D_INNER = 64
LN_EPS = 1e-6

_KV_LAYER = N_HEAD * (D_K + D_V)      # fused K|V feature lanes per layer (= 64)
_F = N_LAYERS * _KV_LAYER             # fused K|V feature lanes total (= 128, lane-dense)


def _layer_norm(x, gamma, beta):
    mean = jnp.mean(x, axis=-1, keepdims=True)
    var = jnp.mean(jnp.square(x - mean), axis=-1, keepdims=True)
    return (x - mean) * lax.rsqrt(var + LN_EPS) * gamma + beta


def _round_up(x, m):
    return ((x + m - 1) // m) * m


# --------------------------------- fused kernel ---------------------------------
def fused_decoder_kernel(dec_ref, enc_ref, bias_ref,
                         wq_ref, wkv_ref, wo_ref,
                         ln1_g_ref, ln1_b_ref, w1_ref, b1_ref,
                         w2_ref, b2_ref, ln2_g_ref, ln2_b_ref,
                         out_ref, attn_ref, eng_ref):
    M = dec_ref.shape[0]                                # bb * Lq query rows in this grid step
    x = dec_ref[...]                                    # (M, D) running decoder activation

    # Fused K|V projection for ALL layers & heads: ONE lane-dense MXU dot.
    # enc rows >= bb*Lk are zero padding -> their K/V rows are exactly zero.
    kv = jnp.dot(enc_ref[...], wkv_ref[...], preferred_element_type=jnp.float32)   # (KP, 128)

    # Additive block-diagonal score bias (host-precomputed): 0 where the query row and key
    # column belong to the same batch element, -1e30 for cross-batch / padding columns.
    bias = bias_ref[...]                                # (M, KP)

    for l in range(N_LAYERS):                           # static unroll: both layers fused
        proj = jnp.zeros((M, D_MODEL), jnp.float32)
        for h in range(N_HEAD):                         # static unroll over heads
            lh = l * N_HEAD + h
            # 1/sqrt(d_k) is folded into wq_pad on the host; wq_pad's nonzero lanes coincide
            # with this head's K lanes inside kv, so the 128-deep contraction below IS the
            # per-head q @ k^T (zero lanes contribute nothing, MXU zeros are free).
            q_pad = jnp.dot(x, wq_ref[lh], preferred_element_type=jnp.float32)     # (M, 128)
            s = lax.dot_general(q_pad, kv, (((1,), (1,)), ((), ())),
                                preferred_element_type=jnp.float32)                # (M, KP)
            # TODO(synk): dec_enc_attn_mask masked_fill(mask==0, -1e9) branch not wired
            #             (mask=None path only; guarded in the wrapper).
            sm = s + bias
            m = jnp.max(sm, axis=-1, keepdims=True)
            e = jnp.exp(sm - m)                         # invalid columns underflow to exactly 0
            a = e / jnp.sum(e, axis=-1, keepdims=True)  # exact softmax (no approx reciprocal)

            # Lane-dense, unmasked (M, 128) stores -- one per layer/head, no stacking.
            eng_ref[l, h] = s
            attn_ref[l, h] = a

            ctx = jnp.dot(a, kv, preferred_element_type=jnp.float32)               # (M, 128)
            # wo_pad has nonzero rows only on this head's V lanes -> selects the V block and
            # projects it to d_model in one dot (no lane slicing of kv).
            proj = proj + jnp.dot(ctx, wo_ref[lh], preferred_element_type=jnp.float32)

        x = _layer_norm(proj + x, ln1_g_ref[l], ln1_b_ref[l])
        h1 = jnp.maximum(
            jnp.dot(x, w1_ref[l], preferred_element_type=jnp.float32) + b1_ref[l], 0.0)
        h2 = jnp.dot(h1, w2_ref[l], preferred_element_type=jnp.float32) + b2_ref[l]
        x = _layer_norm(h2 + x, ln2_g_ref[l], ln2_b_ref[l])

    out_ref[...] = x


# --------------------------------- host-side packing ---------------------------------
def pack_layer_params(layer_params):
    """Stack / fuse per-layer weights for the kernel.

    Lane layout of the fused K|V feature axis (width _F = N_LAYERS * N_HEAD * (D_K+D_V) = 128):
        layer l occupies lanes [l*_KV_LAYER, (l+1)*_KV_LAYER) as [K_h0 | K_h1 | V_h0 | V_h1].
    wq_pad (Q written onto the matching K lanes, pre-scaled by 1/sqrt(d_k)) and wo_pad (original
    W_O rows placed on the matching V lanes, zeros elsewhere) MUST stay in sync with this layout.
    """
    scale = 1.0 / np.sqrt(D_K)

    wkv = jnp.concatenate(
        [jnp.concatenate([p["wk"], p["wv"]], axis=1) for p in layer_params], axis=1)  # (D, _F)

    wq_pad = np.zeros((N_LAYERS * N_HEAD, D_MODEL, _F), np.float32)
    wo_pad = np.zeros((N_LAYERS * N_HEAD, _F, D_MODEL), np.float32)
    for l, p in enumerate(layer_params):
        wq = np.asarray(p["wq"], np.float32) * scale      # fold 1/sqrt(d_k) into the Q proj
        wo = np.asarray(p["wo"], np.float32)
        for h in range(N_HEAD):
            k0 = l * _KV_LAYER + h * D_K                  # this head's K lanes
            v0 = l * _KV_LAYER + N_HEAD * D_K + h * D_V   # this head's V lanes
            wq_pad[l * N_HEAD + h, :, k0:k0 + D_K] = wq[:, h * D_K:(h + 1) * D_K]
            wo_pad[l * N_HEAD + h, v0:v0 + D_V, :] = wo[h * D_V:(h + 1) * D_V, :]

    ln1_g = jnp.stack([p["ln1_g"] for p in layer_params])        # (L, 1, D)
    ln1_b = jnp.stack([p["ln1_b"] for p in layer_params])
    w1 = jnp.stack([p["w1"] for p in layer_params])              # (L, D, D_inner)
    b1 = jnp.stack([p["b1"] for p in layer_params])              # (L, 1, D_inner)
    w2 = jnp.stack([p["w2"] for p in layer_params])              # (L, D_inner, D)
    b2 = jnp.stack([p["b2"] for p in layer_params])              # (L, 1, D)
    ln2_g = jnp.stack([p["ln2_g"] for p in layer_params])
    ln2_b = jnp.stack([p["ln2_b"] for p in layer_params])
    return (jnp.asarray(wq_pad), wkv, jnp.asarray(wo_pad),
            ln1_g, ln1_b, w1, b1, w2, b2, ln2_g, ln2_b)


def _build_score_bias(bb, Lq, Lk, KP):
    """Additive bias: 0 where the (query row, key column) pair is in the same batch element,
    -1e30 for cross-batch pairs and for zero-padding key columns."""
    M = bb * Lq
    rows = np.arange(M)[:, None] // Lq
    cols = np.arange(KP)[None, :]
    valid = (cols // Lk == rows) & (cols < bb * Lk)
    return jnp.asarray(np.where(valid, 0.0, -1e30).astype(np.float32))


def _default_batch_block(B):
    """bb=1 (batch-parallel grid) only where the chip has >1 TensorCore (v7x); otherwise process
    the whole batch in one grid step (grid overhead would only hurt 1-TC v5e/v6e)."""
    try:
        kind = jax.devices()[0].device_kind.lower()
    except Exception:
        kind = ""
    if B > 1 and "v7" in kind:
        return 1
    return B


def _cost_estimate(nblk, M, KP, packed):
    per_head = (2 * M * D_MODEL * _F        # padded Q projection
                + 2 * M * _F * KP           # scores
                + 2 * M * KP * _F           # attn @ kv
                + 2 * M * _F * D_MODEL)     # output projection
    per_step = (2 * KP * D_MODEL * _F       # fused K/V projection
                + N_LAYERS * (N_HEAD * per_head + 2 * 2 * M * D_MODEL * D_INNER))
    flops = nblk * per_step
    transcendentals = nblk * N_LAYERS * N_HEAD * M * KP
    n_out = nblk * (M * D_MODEL + 2 * N_LAYERS * N_HEAD * M * KP)
    n_in = nblk * (M + KP + M) * D_MODEL + sum(int(np.prod(p.shape)) for p in packed)
    return pl.CostEstimate(flops=int(flops), transcendentals=int(transcendentals),
                           bytes_accessed=int(4 * (n_in + n_out)))


# --------------------------------- host-side wrapper ---------------------------------
def decoder_emo_nomul(trg_seq_emb, enc_output, layer_params, mask=None,
                      return_attns=True, batch_block=None):
    """Forward pass matching Decoder_emo_nomul.forward (dec_enc_attn_mask=None path)."""
    if mask is not None:
        # TODO(synk): implement masked_fill(dec_enc_attn_mask == 0, -1e9) (would just add to the
        #             score bias) before using masks.
        raise NotImplementedError("dec_enc_attn_mask is not supported by this Pallas kernel")

    B, Lq, D = trg_seq_emb.shape
    Lk = enc_output.shape[1]
    assert D == D_MODEL

    bb = batch_block if batch_block is not None else _default_batch_block(B)
    assert B % bb == 0, "batch_block must divide the batch size"
    nblk = B // bb                       # grid length (1 on v5e/v6e default; B on v7x default)
    M = bb * Lq                          # query rows per grid step
    KP = _round_up(bb * Lk, 128)         # key columns per grid step (lane-dense)
    L, H = N_LAYERS, N_HEAD

    packed = pack_layer_params(layer_params)
    dec_flat = trg_seq_emb.reshape(B * Lq, D_MODEL)
    # Flatten + zero-pad enc_output so each grid step sees a (KP, D) block with its bb batch
    # elements' keys stacked at rows [i*Lk, (i+1)*Lk) and zeros above bb*Lk.
    enc_pad = jnp.pad(enc_output.reshape(nblk, bb * Lk, D_MODEL),
                      ((0, 0), (0, KP - bb * Lk), (0, 0))).reshape(nblk * KP, D_MODEL)
    score_bias = _build_score_bias(bb, Lq, Lk, KP)

    const2 = lambda g: (0, 0)
    const3 = lambda g: (0, 0, 0)
    # All blocked specs live in VMEM (Pallas default for blocked TPU specs).
    in_specs = [
        pl.BlockSpec((M, D_MODEL), lambda g: (g, 0)),            # dec (flat)
        pl.BlockSpec((KP, D_MODEL), lambda g: (g, 0)),           # enc (flat, zero-padded)
        pl.BlockSpec((M, KP), const2),                           # score bias
        pl.BlockSpec((L * H, D_MODEL, _F), const3),              # wq_pad
        pl.BlockSpec((D_MODEL, _F), const2),                     # wkv (fused K|V)
        pl.BlockSpec((L * H, _F, D_MODEL), const3),              # wo_pad
        pl.BlockSpec((L, 1, D_MODEL), const3),                   # ln1_g
        pl.BlockSpec((L, 1, D_MODEL), const3),                   # ln1_b
        pl.BlockSpec((L, D_MODEL, D_INNER), const3),             # w1
        pl.BlockSpec((L, 1, D_INNER), const3),                   # b1
        pl.BlockSpec((L, D_INNER, D_MODEL), const3),             # w2
        pl.BlockSpec((L, 1, D_MODEL), const3),                   # b2
        pl.BlockSpec((L, 1, D_MODEL), const3),                   # ln2_g
        pl.BlockSpec((L, 1, D_MODEL), const3),                   # ln2_b
    ]
    out_specs = (
        pl.BlockSpec((M, D_MODEL), lambda g: (g, 0)),
        pl.BlockSpec((L, H, M, KP), lambda g: (0, 0, g, 0)),
        pl.BlockSpec((L, H, M, KP), lambda g: (0, 0, g, 0)),
    )
    out_shapes = (
        jax.ShapeDtypeStruct((B * Lq, D_MODEL), jnp.float32),
        jax.ShapeDtypeStruct((L, H, B * Lq, KP), jnp.float32),   # attn (post-softmax, padded)
        jax.ShapeDtypeStruct((L, H, B * Lq, KP), jnp.float32),   # energies (pre-softmax, padded)
    )

    out_flat, attn_raw, eng_raw = pl.pallas_call(
        fused_decoder_kernel,
        grid=(nblk,),
        in_specs=in_specs,
        out_specs=out_specs,
        out_shape=out_shapes,
        compiler_params=pltpu.CompilerParams(
            dimension_semantics=("parallel",),           # grid steps touch disjoint output rows
            vmem_limit_bytes=32 * 1024 * 1024),
        cost_estimate=_cost_estimate(nblk, M, KP, packed),
    )(dec_flat, enc_pad, score_bias, *packed)

    dec_output = out_flat.reshape(B, Lq, D_MODEL)

    def _extract(raw):
        # (L, H, B*Lq, KP) -> (L, B, H, Lq, Lk): drop padding / cross-batch key columns.
        r = raw.reshape(L, H, B, Lq, KP)
        per_b = [r[:, :, b, :, (b % bb) * Lk:(b % bb) * Lk + Lk] for b in range(B)]
        return jnp.transpose(jnp.stack(per_b, axis=2), (0, 2, 1, 3, 4))

    attn_full = _extract(attn_raw)
    eng_full = _extract(eng_raw)
    attn_list = [attn_full[l] for l in range(L)]
    eng_list = [eng_full[l] for l in range(L)]
    if return_attns:
        return dec_output, attn_list, eng_list
    return dec_output, eng_list[-1]


# ---------------- deterministic parameter init (nn.Linear-style uniform) ----------------
def init_layer_params(key):
    ks = jax.random.split(key, 8)

    def lin(k, fan_in, fan_out):
        bound = 1.0 / np.sqrt(fan_in)
        return jax.random.uniform(k, (fan_in, fan_out), jnp.float32, -bound, bound)

    return {
        "wq": lin(ks[0], D_MODEL, N_HEAD * D_K),
        "wk": lin(ks[1], D_MODEL, N_HEAD * D_K),
        "wv": lin(ks[2], D_MODEL, N_HEAD * D_V),
        "wo": lin(ks[3], N_HEAD * D_V, D_MODEL),
        "ln1_g": jnp.ones((1, D_MODEL), jnp.float32),
        "ln1_b": jnp.zeros((1, D_MODEL), jnp.float32),
        "w1": lin(ks[4], D_MODEL, D_INNER),
        "b1": jax.random.uniform(ks[5], (1, D_INNER), jnp.float32, -0.1, 0.1),
        "w2": lin(ks[6], D_INNER, D_MODEL),
        "b2": jax.random.uniform(ks[7], (1, D_MODEL), jnp.float32, -0.1, 0.1),
        "ln2_g": jnp.ones((1, D_MODEL), jnp.float32),
        "ln2_b": jnp.zeros((1, D_MODEL), jnp.float32),
    }


# ---------------- pure-JAX reference (for numerical verification) ----------------
def ref_layer(dec, enc, p):
    B, Lq, _ = dec.shape
    Lk = enc.shape[1]
    q = (dec @ p["wq"]).reshape(B, Lq, N_HEAD, D_K).transpose(0, 2, 1, 3)
    k = (enc @ p["wk"]).reshape(B, Lk, N_HEAD, D_K).transpose(0, 2, 1, 3)
    v = (enc @ p["wv"]).reshape(B, Lk, N_HEAD, D_V).transpose(0, 2, 1, 3)
    eng = jnp.einsum("bhqd,bhkd->bhqk", q, k) / np.sqrt(D_K)
    attn = jax.nn.softmax(eng, axis=-1)
    o = jnp.einsum("bhqk,bhkd->bhqd", attn, v).transpose(0, 2, 1, 3).reshape(B, Lq, N_HEAD * D_V)
    x = _layer_norm(o @ p["wo"] + dec, p["ln1_g"], p["ln1_b"])
    h1 = jax.nn.relu(x @ p["w1"] + p["b1"])
    y = _layer_norm(h1 @ p["w2"] + p["b2"] + x, p["ln2_g"], p["ln2_b"])
    return y, attn, eng


if __name__ == "__main__":
    key = jax.random.PRNGKey(0)
    k_trg, k_enc, k_par = jax.random.split(key, 3)

    B, Lq, Lk = 2, 8, 10
    trg_seq_emb = jax.random.normal(k_trg, (B, Lq, D_MODEL), jnp.float32)
    enc_output = jax.random.normal(k_enc, (B, Lk, D_MODEL), jnp.float32)
    layer_params = [init_layer_params(k) for k in jax.random.split(k_par, N_LAYERS)]

    # Pure-JAX reference.
    ref = trg_seq_emb
    ref_attns, ref_engs = [], []
    for p in layer_params:
        ref, ra, re = ref_layer(ref, enc_output, p)
        ref_attns.append(ra)
        ref_engs.append(re)

    # Exercise BOTH execution paths: batch_block=B (single grid step, v5e/v6e default) and
    # batch_block=1 (batch-parallel grid for v7x megacore).  Exact softmax lets us verify with
    # tight tolerances again (no approx reciprocal).
    for bb in (B, 1):
        dec_out, attn_list, eng_list = decoder_emo_nomul(
            trg_seq_emb, enc_output, layer_params, batch_block=bb)
        jax.block_until_ready(dec_out)
        np.testing.assert_allclose(np.asarray(dec_out), np.asarray(ref), rtol=5e-4, atol=5e-4)
        for a, ra in zip(attn_list, ref_attns):
            np.testing.assert_allclose(np.asarray(a), np.asarray(ra), rtol=5e-4, atol=5e-4)
        for e, re_ in zip(eng_list, ref_engs):
            np.testing.assert_allclose(np.asarray(e), np.asarray(re_), rtol=5e-4, atol=5e-4)

    # Default path (auto batch_block selection from the device kind).
    dec_out, _, _ = decoder_emo_nomul(trg_seq_emb, enc_output, layer_params)
    jax.block_until_ready(dec_out)

    print("KERNEL_OK")
</pallas_src>

<mosaic_0001>
module attributes {stable_mosaic.version = 11 : i64} {
  func.func @fused_decoder_kernel(%arg0: i32, %arg1: memref<16x32xf32, #tpu.memory_space<vmem>>, %arg2: memref<128x32xf32, #tpu.memory_space<vmem>>, %arg3: memref<16x128xf32, #tpu.memory_space<vmem>>, %arg4: memref<4x32x128xf32, #tpu.memory_space<vmem>>, %arg5: memref<32x128xf32, #tpu.memory_space<vmem>>, %arg6: memref<4x128x32xf32, #tpu.memory_space<vmem>>, %arg7: memref<2x1x32xf32, #tpu.memory_space<vmem>>, %arg8: memref<2x1x32xf32, #tpu.memory_space<vmem>>, %arg9: memref<2x32x64xf32, #tpu.memory_space<vmem>>, %arg10: memref<2x1x64xf32, #tpu.memory_space<vmem>>, %arg11: memref<2x64x32xf32, #tpu.memory_space<vmem>>, %arg12: memref<2x1x32xf32, #tpu.memory_space<vmem>>, %arg13: memref<2x1x32xf32, #tpu.memory_space<vmem>>, %arg14: memref<2x1x32xf32, #tpu.memory_space<vmem>>, %arg15: memref<16x32xf32, #tpu.memory_space<vmem>>, %arg16: memref<2x2x16x128xf32, #tpu.memory_space<vmem>>, %arg17: memref<2x2x16x128xf32, #tpu.memory_space<vmem>>) attributes {dimension_semantics = [#tpu.dimension_semantics<parallel>], iteration_bounds = array<i64: 1>, scalar_prefetch = 0 : i64, scratch_operands = 0 : i64, tpu.core_type = #tpu.core_type<tc>, window_params = [{transform_indices = @transform_0, window_bounds = array<i64: 16, 32>}, {transform_indices = @transform_1, window_bounds = array<i64: 128, 32>}, {pipeline_mode = #tpu.pipeline_mode<synchronous>, transform_indices = @transform_2, window_bounds = array<i64: 16, 128>}, {pipeline_mode = #tpu.pipeline_mode<synchronous>, transform_indices = @transform_3, window_bounds = array<i64: 4, 32, 128>}, {pipeline_mode = #tpu.pipeline_mode<synchronous>, transform_indices = @transform_4, window_bounds = array<i64: 32, 128>}, {pipeline_mode = #tpu.pipeline_mode<synchronous>, transform_indices = @transform_5, window_bounds = array<i64: 4, 128, 32>}, {pipeline_mode = #tpu.pipeline_mode<synchronous>, transform_indices = @transform_6, window_bounds = array<i64: 2, 1, 32>}, {pipeline_mode = #tpu.pipeline_mode<synchronous>, transform_indices = @transform_7, window_bounds = array<i64: 2, 1, 32>}, {pipeline_mode = #tpu.pipeline_mode<synchronous>, transform_indices = @transform_8, window_bounds = array<i64: 2, 32, 64>}, {pipeline_mode = #tpu.pipeline_mode<synchronous>, transform_indices = @transform_9, window_bounds = array<i64: 2, 1, 64>}, {pipeline_mode = #tpu.pipeline_mode<synchronous>, transform_indices = @transform_10, window_bounds = array<i64: 2, 64, 32>}, {pipeline_mode = #tpu.pipeline_mode<synchronous>, transform_indices = @transform_11, window_bounds = array<i64: 2, 1, 32>}, {pipeline_mode = #tpu.pipeline_mode<synchronous>, transform_indices = @transform_12, window_bounds = array<i64: 2, 1, 32>}, {pipeline_mode = #tpu.pipeline_mode<synchronous>, transform_indices = @transform_13, window_bounds = array<i64: 2, 1, 32>}, {transform_indices = @transform_14, window_bounds = array<i64: 16, 32>}, {transform_indices = @transform_15, window_bounds = array<i64: 2, 2, 16, 128>}, {transform_indices = @transform_16, window_bounds = array<i64: 2, 2, 16, 128>}]} {
    %c0 = arith.constant 0 : index
    %c0_0 = arith.constant 0 : index
    %0 = vector.load %arg1[%c0, %c0_0] : memref<16x32xf32, #tpu.memory_space<vmem>>, vector<16x32xf32>
    %c0_1 = arith.constant 0 : index
    %c0_2 = arith.constant 0 : index
    %1 = vector.load %arg2[%c0_1, %c0_2] : memref<128x32xf32, #tpu.memory_space<vmem>>, vector<128x32xf32>
    %c0_3 = arith.constant 0 : index
    %c0_4 = arith.constant 0 : index
    %2 = vector.load %arg5[%c0_3, %c0_4] : memref<32x128xf32, #tpu.memory_space<vmem>>, vector<32x128xf32>
    %cst = arith.constant dense<0.000000e+00> : vector<128x128xf32>
    %3 = tpu.matmul %1, %2, %cst {dimension_numbers = #tpu.dot_dimension_numbers<[1], [0], [0], [1], [0, 0, 1, 1], [], []>} : vector<128x32xf32>, vector<32x128xf32>, vector<128x128xf32> -> vector<128x128xf32>
    %c0_5 = arith.constant 0 : index
    %c0_6 = arith.constant 0 : index
    %4 = vector.load %arg3[%c0_5, %c0_6] : memref<16x128xf32, #tpu.memory_space<vmem>>, vector<16x128xf32>
    %cst_7 = arith.constant 0.000000e+00 : f32
    %5 = vector.broadcast %cst_7 : f32 to vector<16x32xf32>
    %c0_8 = arith.constant 0 : index
    %c0_9 = arith.constant 0 : index
    %c0_10 = arith.constant 0 : index
    %6 = vector.load %arg4[%c0_8, %c0_9, %c0_10] : memref<4x32x128xf32, #tpu.memory_space<vmem>>, vector<1x32x128xf32>
    %7 = vector.shape_cast %6 : vector<1x32x128xf32> to vector<32x128xf32>
    %cst_11 = arith.constant dense<0.000000e+00> : vector<16x128xf32>
    %8 = tpu.matmul %0, %7, %cst_11 {dimension_numbers = #tpu.dot_dimension_numbers<[1], [0], [0], [1], [0, 0, 1, 1], [], []>} : vector<16x32xf32>, vector<32x128xf32>, vector<16x128xf32> -> vector<16x128xf32>
    %cst_12 = arith.constant dense<0.000000e+00> : vector<16x128xf32>
    %9 = tpu.matmul %8, %3, %cst_12 {dimension_numbers = #tpu.dot_dimension_numbers<[1], [1], [0], [0], [0, 0, 1, 0], [], []>} : vector<16x128xf32>, vector<128x128xf32>, vector<16x128xf32> -> vector<16x128xf32>
    %10 = arith.addf %9, %4 : vector<16x128xf32>
    %cst_13 = arith.constant dense<0xFF800000> : vector<16xf32>
    %11 = vector.multi_reduction <maximumf>, %10, %cst_13 [1] : vector<16x128xf32> to vector<16xf32>
    %12 = vector.shape_cast %11 : vector<16xf32> to vector<16x1xf32>
    %13 = vector.broadcast %12 : vector<16x1xf32> to vector<16x128xf32>
    %14 = arith.subf %10, %13 : vector<16x128xf32>
    %15 = math.exp %14 : vector<16x128xf32>
    %cst_14 = arith.constant dense<0.000000e+00> : vector<16xf32>
    %16 = vector.multi_reduction <add>, %15, %cst_14 [1] : vector<16x128xf32> to vector<16xf32>
    %17 = vector.shape_cast %16 : vector<16xf32> to vector<16x1xf32>
    %18 = vector.broadcast %17 : vector<16x1xf32> to vector<16x128xf32>
    %19 = arith.divf %15, %18 : vector<16x128xf32>
    %c0_15 = arith.constant 0 : index
    %c0_16 = arith.constant 0 : index
    %c0_17 = arith.constant 0 : index
    %c0_18 = arith.constant 0 : index
    %20 = vector.load %arg17[%c0_15, %c0_16, %c0_17, %c0_18] : memref<2x2x16x128xf32, #tpu.memory_space<vmem>>, vector<1x1x16x128xf32>
    %21 = vector.shape_cast %20 : vector<1x1x16x128xf32> to vector<16x128xf32>
    %22 = vector.shape_cast %9 : vector<16x128xf32> to vector<1x1x16x128xf32>
    tpu.vector_store %arg17[%c0_15, %c0_16, %c0_17, %c0_18], %22 {strides = array<i32>} : memref<2x2x16x128xf32, #tpu.memory_space<vmem>>, vector<1x1x16x128xf32>,
    %c0_19 = arith.constant 0 : index
    %c0_20 = arith.constant 0 : index
    %c0_21 = arith.constant 0 : index
    %c0_22 = arith.constant 0 : index
    %23 = vector.load %arg16[%c0_19, %c0_20, %c0_21, %c0_22] : memref<2x2x16x128xf32, #tpu.memory_space<vmem>>, vector<1x1x16x128xf32>
    %24 = vector.shape_cast %23 : vector<1x1x16x128xf32> to vector<16x128xf32>
    %25 = vector.shape_cast %19 : vector<16x128xf32> to vector<1x1x16x128xf32>
    tpu.vector_store %arg16[%c0_19, %c0_20, %c0_21, %c0_22], %25 {strides = array<i32>} : memref<2x2x16x128xf32, #tpu.memory_space<vmem>>, vector<1x1x16x128xf32>,
    %cst_23 = arith.constant dense<0.000000e+00> : vector<16x128xf32>
    %26 = tpu.matmul %19, %3, %cst_23 {dimension_numbers = #tpu.dot_dimension_numbers<[1], [0], [0], [1], [0, 0, 1, 1], [], []>} : vector<16x128xf32>, vector<128x128xf32>, vector<16x128xf32> -> vector<16x128xf32>
    %c0_24 = arith.constant 0 : index
    %c0_25 = arith.constant 0 : index
    %c0_26 = arith.constant 0 : index
    %27 = vector.load %arg6[%c0_24, %c0_25, %c0_26] : memref<4x128x32xf32, #tpu.memory_space<vmem>>, vector<1x128x32xf32>
    %28 = vector.shape_cast %27 : vector<1x128x32xf32> to vector<128x32xf32>
    %cst_27 = arith.constant dense<0.000000e+00> : vector<16x32xf32>
    %29 = tpu.matmul %26, %28, %cst_27 {dimension_numbers = #tpu.dot_dimension_numbers<[1], [0], [0], [1], [0, 0, 1, 1], [], []>} : vector<16x128xf32>, vector<128x32xf32>, vector<16x32xf32> -> vector<16x32xf32>
    %30 = arith.addf %5, %29 : vector<16x32xf32>
    %c1 = arith.constant 1 : index
    %c0_28 = arith.constant 0 : index
    %c0_29 = arith.constant 0 : index
    %31 = vector.load %arg4[%c1, %c0_28, %c0_29] : memref<4x32x128xf32, #tpu.memory_space<vmem>>, vector<1x32x128xf32>
    %32 = vector.shape_cast %31 : vector<1x32x128xf32> to vector<32x128xf32>
    %cst_30 = arith.constant dense<0.000000e+00> : vector<16x128xf32>
    %33 = tpu.matmul %0, %32, %cst_30 {dimension_numbers = #tpu.dot_dimension_numbers<[1], [0], [0], [1], [0, 0, 1, 1], [], []>} : vector<16x32xf32>, vector<32x128xf32>, vector<16x128xf32> -> vector<16x128xf32>
    %cst_31 = arith.constant dense<0.000000e+00> : vector<16x128xf32>
    %34 = tpu.matmul %33, %3, %cst_31 {dimension_numbers = #tpu.dot_dimension_numbers<[1], [1], [0], [0], [0, 0, 1, 0], [], []>} : vector<16x128xf32>, vector<128x128xf32>, vector<16x128xf32> -> vector<16x128xf32>
    %35 = arith.addf %34, %4 : vector<16x128xf32>
    %cst_32 = arith.constant dense<0xFF800000> : vector<16xf32>
    %36 = vector.multi_reduction <maximumf>, %35, %cst_32 [1] : vector<16x128xf32> to vector<16xf32>
    %37 = vector.shape_cast %36 : vector<16xf32> to vector<16x1xf32>
    %38 = vector.broadcast %37 : vector<16x1xf32> to vector<16x128xf32>
    %39 = arith.subf %35, %38 : vector<16x128xf32>
    %40 = math.exp %39 : vector<16x128xf32>
    %cst_33 = arith.constant dense<0.000000e+00> : vector<16xf32>
    %41 = vector.multi_reduction <add>, %40, %cst_33 [1] : vector<16x128xf32> to vector<16xf32>
    %42 = vector.shape_cast %41 : vector<16xf32> to vector<16x1xf32>
    %43 = vector.broadcast %42 : vector<16x1xf32> to vector<16x128xf32>
    %44 = arith.divf %40, %43 : vector<16x128xf32>
    %c0_34 = arith.constant 0 : index
    %c1_35 = arith.constant 1 : index
    %c0_36 = arith.constant 0 : index
    %c0_37 = arith.constant 0 : index
    %45 = vector.load %arg17[%c0_34, %c1_35, %c0_36, %c0_37] : memref<2x2x16x128xf32, #tpu.memory_space<vmem>>, vector<1x1x16x128xf32>
    %46 = vector.shape_cast %45 : vector<1x1x16x128xf32> to vector<16x128xf32>
    %47 = vector.shape_cast %34 : vector<16x128xf32> to vector<1x1x16x128xf32>
    tpu.vector_store %arg17[%c0_34, %c1_35, %c0_36, %c0_37], %47 {strides = array<i32>} : memref<2x2x16x128xf32, #tpu.memory_space<vmem>>, vector<1x1x16x128xf32>,
    %c0_38 = arith.constant 0 : index
    %c1_39 = arith.constant 1 : index
    %c0_40 = arith.constant 0 : index
    %c0_41 = arith.constant 0 : index
    %48 = vector.load %arg16[%c0_38, %c1_39, %c0_40, %c0_41] : memref<2x2x16x128xf32, #tpu.memory_space<vmem>>, vector<1x1x16x128xf32>
    %49 = vector.shape_cast %48 : vector<1x1x16x128xf32> to vector<16x128xf32>
    %50 = vector.shape_cast %44 : vector<16x128xf32> to vector<1x1x16x128xf32>
    tpu.vector_store %arg16[%c0_38, %c1_39, %c0_40, %c0_41], %50 {strides = array<i32>} : memref<2x2x16x128xf32, #tpu.memory_space<vmem>>, vector<1x1x16x128xf32>,
    %cst_42 = arith.constant dense<0.000000e+00> : vector<16x128xf32>
    %51 = tpu.matmul %44, %3, %cst_42 {dimension_numbers = #tpu.dot_dimension_numbers<[1], [0], [0], [1], [0, 0, 1, 1], [], []>} : vector<16x128xf32>, vector<128x128xf32>, vector<16x128xf32> -> vector<16x128xf32>
    %c1_43 = arith.constant 1 : index
    %c0_44 = arith.constant 0 : index
    %c0_45 = arith.constant 0 : index
    %52 = vector.load %arg6[%c1_43, %c0_44, %c0_45] : memref<4x128x32xf32, #tpu.memory_space<vmem>>, vector<1x128x32xf32>
    %53 = vector.shape_cast %52 : vector<1x128x32xf32> to vector<128x32xf32>
    %cst_46 = arith.constant dense<0.000000e+00> : vector<16x32xf32>
    %54 = tpu.matmul %51, %53, %cst_46 {dimension_numbers = #tpu.dot_dimension_numbers<[1], [0], [0], [1], [0, 0, 1, 1], [], []>} : vector<16x128xf32>, vector<128x32xf32>, vector<16x32xf32> -> vector<16x32xf32>
    %55 = arith.addf %30, %54 : vector<16x32xf32>
    %56 = arith.addf %55, %0 : vector<16x32xf32>
    %c0_47 = arith.constant 0 : index
    %c0_48 = arith.constant 0 : index
    %c0_49 = arith.constant 0 : index
    %57 = vector.load %arg7[%c0_47, %c0_48, %c0_49] : memref<2x1x32xf32, #tpu.memory_space<vmem>>, vector<1x1x32xf32>
    %58 = vector.shape_cast %57 : vector<1x1x32xf32> to vector<1x32xf32>
    %c0_50 = arith.constant 0 : index
    %c0_51 = arith.constant 0 : index
    %c0_52 = arith.constant 0 : index
    %59 = vector.load %arg8[%c0_50, %c0_51, %c0_52] : memref<2x1x32xf32, #tpu.memory_space<vmem>>, vector<1x1x32xf32>
    %60 = vector.shape_cast %59 : vector<1x1x32xf32> to vector<1x32xf32>
    %cst_53 = arith.constant dense<0.000000e+00> : vector<16xf32>
    %61 = vector.multi_reduction <add>, %56, %cst_53 [1] : vector<16x32xf32> to vector<16xf32>
    %62 = vector.shape_cast %61 : vector<16xf32> to vector<16x1xf32>
    %cst_54 = arith.constant 3.200000e+01 : f32
    %63 = vector.broadcast %cst_54 : f32 to vector<16x1xf32>
    %64 = arith.divf %62, %63 : vector<16x1xf32>
    %65 = vector.broadcast %64 : vector<16x1xf32> to vector<16x32xf32>
    %66 = arith.subf %56, %65 : vector<16x32xf32>
    %67 = arith.mulf %66, %66 : vector<16x32xf32>
    %cst_55 = arith.constant dense<0.000000e+00> : vector<16xf32>
    %68 = vector.multi_reduction <add>, %67, %cst_55 [1] : vector<16x32xf32> to vector<16xf32>
    %69 = vector.shape_cast %68 : vector<16xf32> to vector<16x1xf32>
    %cst_56 = arith.constant 3.200000e+01 : f32
    %70 = vector.broadcast %cst_56 : f32 to vector<16x1xf32>
    %71 = arith.divf %69, %70 : vector<16x1xf32>
    %72 = vector.broadcast %64 : vector<16x1xf32> to vector<16x32xf32>
    %73 = arith.subf %56, %72 : vector<16x32xf32>
    %cst_57 = arith.constant 9.99999997E-7 : f32
    %74 = vector.broadcast %cst_57 : f32 to vector<16x1xf32>
    %75 = arith.addf %71, %74 : vector<16x1xf32>
    %76 = math.rsqrt %75 : vector<16x1xf32>
    %77 = vector.broadcast %76 : vector<16x1xf32> to vector<16x32xf32>
    %78 = arith.mulf %73, %77 : vector<16x32xf32>
    %79 = vector.broadcast %58 : vector<1x32xf32> to vector<16x32xf32>
    %80 = arith.mulf %78, %79 : vector<16x32xf32>
    %81 = vector.broadcast %60 : vector<1x32xf32> to vector<16x32xf32>
    %82 = arith.addf %80, %81 : vector<16x32xf32>
    %c0_58 = arith.constant 0 : index
    %c0_59 = arith.constant 0 : index
    %c0_60 = arith.constant 0 : index
    %83 = vector.load %arg9[%c0_58, %c0_59, %c0_60] : memref<2x32x64xf32, #tpu.memory_space<vmem>>, vector<1x32x64xf32>
    %84 = vector.shape_cast %83 : vector<1x32x64xf32> to vector<32x64xf32>
    %cst_61 = arith.constant dense<0.000000e+00> : vector<16x64xf32>
    %85 = tpu.matmul %82, %84, %cst_61 {dimension_numbers = #tpu.dot_dimension_numbers<[1], [0], [0], [1], [0, 0, 1, 1], [], []>} : vector<16x32xf32>, vector<32x64xf32>, vector<16x64xf32> -> vector<16x64xf32>
    %c0_62 = arith.constant 0 : index
    %c0_63 = arith.constant 0 : index
    %c0_64 = arith.constant 0 : index
    %86 = vector.load %arg10[%c0_62, %c0_63, %c0_64] : memref<2x1x64xf32, #tpu.memory_space<vmem>>, vector<1x1x64xf32>
    %87 = vector.shape_cast %86 : vector<1x1x64xf32> to vector<1x64xf32>
    %88 = vector.broadcast %87 : vector<1x64xf32> to vector<16x64xf32>
    %89 = arith.addf %85, %88 : vector<16x64xf32>
    %cst_65 = arith.constant 0.000000e+00 : f32
    %90 = vector.broadcast %cst_65 : f32 to vector<16x64xf32>
    %91 = arith.maximumf %89, %90 : vector<16x64xf32>
    %c0_66 = arith.constant 0 : index
    %c0_67 = arith.constant 0 : index
    %c0_68 = arith.constant 0 : index
    %92 = vector.load %arg11[%c0_66, %c0_67, %c0_68] : memref<2x64x32xf32, #tpu.memory_space<vmem>>, vector<1x64x32xf32>
    %93 = vector.shape_cast %92 : vector<1x64x32xf32> to vector<64x32xf32>
    %cst_69 = arith.constant dense<0.000000e+00> : vector<16x32xf32>
    %94 = tpu.matmul %91, %93, %cst_69 {dimension_numbers = #tpu.dot_dimension_numbers<[1], [0], [0], [1], [0, 0, 1, 1], [], []>} : vector<16x64xf32>, vector<64x32xf32>, vector<16x32xf32> -> vector<16x32xf32>
    %c0_70 = arith.constant 0 : index
    %c0_71 = arith.constant 0 : index
    %c0_72 = arith.constant 0 : index
    %95 = vector.load %arg12[%c0_70, %c0_71, %c0_72] : memref<2x1x32xf32, #tpu.memory_space<vmem>>, vector<1x1x32xf32>
    %96 = vector.shape_cast %95 : vector<1x1x32xf32> to vector<1x32xf32>
    %97 = vector.broadcast %96 : vector<1x32xf32> to vector<16x32xf32>
    %98 = arith.addf %94, %97 : vector<16x32xf32>
    %99 = arith.addf %98, %82 : vector<16x32xf32>
    %c0_73 = arith.constant 0 : index
    %c0_74 = arith.constant 0 : index
    %c0_75 = arith.constant 0 : index
    %100 = vector.load %arg13[%c0_73, %c0_74, %c0_75] : memref<2x1x32xf32, #tpu.memory_space<vmem>>, vector<1x1x32xf32>
    %101 = vector.shape_cast %100 : vector<1x1x32xf32> to vector<1x32xf32>
    %c0_76 = arith.constant 0 : index
    %c0_77 = arith.constant 0 : index
    %c0_78 = arith.constant 0 : index
    %102 = vector.load %arg14[%c0_76, %c0_77, %c0_78] : memref<2x1x32xf32, #tpu.memory_space<vmem>>, vector<1x1x32xf32>
    %103 = vector.shape_cast %102 : vector<1x1x32xf32> to vector<1x32xf32>
    %cst_79 = arith.constant dense<0.000000e+00> : vector<16xf32>
    %104 = vector.multi_reduction <add>, %99, %cst_79 [1] : vector<16x32xf32> to vector<16xf32>
    %105 = vector.shape_cast %104 : vector<16xf32> to vector<16x1xf32>
    %cst_80 = arith.constant 3.200000e+01 : f32
    %106 = vector.broadcast %cst_80 : f32 to vector<16x1xf32>
    %107 = arith.divf %105, %106 : vector<16x1xf32>
    %108 = vector.broadcast %107 : vector<16x1xf32> to vector<16x32xf32>
    %109 = arith.subf %99, %108 : vector<16x32xf32>
    %110 = arith.mulf %109, %109 : vector<16x32xf32>
    %cst_81 = arith.constant dense<0.000000e+00> : vector<16xf32>
    %111 = vector.multi_reduction <add>, %110, %cst_81 [1] : vector<16x32xf32> to vector<16xf32>
    %112 = vector.shape_cast %111 : vector<16xf32> to vector<16x1xf32>
    %cst_82 = arith.constant 3.200000e+01 : f32
    %113 = vector.broadcast %cst_82 : f32 to vector<16x1xf32>
    %114 = arith.divf %112, %113 : vector<16x1xf32>
    %115 = vector.broadcast %107 : vector<16x1xf32> to vector<16x32xf32>
    %116 = arith.subf %99, %115 : vector<16x32xf32>
    %cst_83 = arith.constant 9.99999997E-7 : f32
    %117 = vector.broadcast %cst_83 : f32 to vector<16x1xf32>
    %118 = arith.addf %114, %117 : vector<16x1xf32>
    %119 = math.rsqrt %118 : vector<16x1xf32>
    %120 = vector.broadcast %119 : vector<16x1xf32> to vector<16x32xf32>
    %121 = arith.mulf %116, %120 : vector<16x32xf32>
    %122 = vector.broadcast %101 : vector<1x32xf32> to vector<16x32xf32>
    %123 = arith.mulf %121, %122 : vector<16x32xf32>
    %124 = vector.broadcast %103 : vector<1x32xf32> to vector<16x32xf32>
    %125 = arith.addf %123, %124 : vector<16x32xf32>
    %cst_84 = arith.constant 0.000000e+00 : f32
    %126 = vector.broadcast %cst_84 : f32 to vector<16x32xf32>
    %c2 = arith.constant 2 : index
    %c0_85 = arith.constant 0 : index
    %c0_86 = arith.constant 0 : index
    %127 = vector.load %arg4[%c2, %c0_85, %c0_86] : memref<4x32x128xf32, #tpu.memory_space<vmem>>, vector<1x32x128xf32>
    %128 = vector.shape_cast %127 : vector<1x32x128xf32> to vector<32x128xf32>
    %cst_87 = arith.constant dense<0.000000e+00> : vector<16x128xf32>
    %129 = tpu.matmul %125, %128, %cst_87 {dimension_numbers = #tpu.dot_dimension_numbers<[1], [0], [0], [1], [0, 0, 1, 1], [], []>} : vector<16x32xf32>, vector<32x128xf32>, vector<16x128xf32> -> vector<16x128xf32>
    %cst_88 = arith.constant dense<0.000000e+00> : vector<16x128xf32>
    %130 = tpu.matmul %129, %3, %cst_88 {dimension_numbers = #tpu.dot_dimension_numbers<[1], [1], [0], [0], [0, 0, 1, 0], [], []>} : vector<16x128xf32>, vector<128x128xf32>, vector<16x128xf32> -> vector<16x128xf32>
    %131 = arith.addf %130, %4 : vector<16x128xf32>
    %cst_89 = arith.constant dense<0xFF800000> : vector<16xf32>
    %132 = vector.multi_reduction <maximumf>, %131, %cst_89 [1] : vector<16x128xf32> to vector<16xf32>
    %133 = vector.shape_cast %132 : vector<16xf32> to vector<16x1xf32>
    %134 = vector.broadcast %133 : vector<16x1xf32> to vector<16x128xf32>
    %135 = arith.subf %131, %134 : vector<16x128xf32>
    %136 = math.exp %135 : vector<16x128xf32>
    %cst_90 = arith.constant dense<0.000000e+00> : vector<16xf32>
    %137 = vector.multi_reduction <add>, %136, %cst_90 [1] : vector<16x128xf32> to vector<16xf32>
    %138 = vector.shape_cast %137 : vector<16xf32> to vector<16x1xf32>
    %139 = vector.broadcast %138 : vector<16x1xf32> to vector<16x128xf32>
    %140 = arith.divf %136, %139 : vector<16x128xf32>
    %c1_91 = arith.constant 1 : index
    %c0_92 = arith.constant 0 : index
    %c0_93 = arith.constant 0 : index
    %c0_94 = arith.constant 0 : index
    %141 = vector.load %arg17[%c1_91, %c0_92, %c0_93, %c0_94] : memref<2x2x16x128xf32, #tpu.memory_space<vmem>>, vector<1x1x16x128xf32>
    %142 = vector.shape_cast %141 : vector<1x1x16x128xf32> to vector<16x128xf32>
    %143 = vector.shape_cast %130 : vector<16x128xf32> to vector<1x1x16x128xf32>
    tpu.vector_store %arg17[%c1_91, %c0_92, %c0_93, %c0_94], %143 {strides = array<i32>} : memref<2x2x16x128xf32, #tpu.memory_space<vmem>>, vector<1x1x16x128xf32>,
    %c1_95 = arith.constant 1 : index
    %c0_96 = arith.constant 0 : index
    %c0_97 = arith.constant 0 : index
    %c0_98 = arith.constant 0 : index
    %144 = vector.load %arg16[%c1_95, %c0_96, %c0_97, %c0_98] : memref<2x2x16x128xf32, #tpu.memory_space<vmem>>, vector<1x1x16x128xf32>
    %145 = vector.shape_cast %144 : vector<1x1x16x128xf32> to vector<16x128xf32>
    %146 = vector.shape_cast %140 : vector<16x128xf32> to vector<1x1x16x128xf32>
    tpu.vector_store %arg16[%c1_95, %c0_96, %c0_97, %c0_98], %146 {strides = array<i32>} : memref<2x2x16x128xf32, #tpu.memory_space<vmem>>, vector<1x1x16x128xf32>,
    %cst_99 = arith.constant dense<0.000000e+00> : vector<16x128xf32>
    %147 = tpu.matmul %140, %3, %cst_99 {dimension_numbers = #tpu.dot_dimension_numbers<[1], [0], [0], [1], [0, 0, 1, 1], [], []>} : vector<16x128xf32>, vector<128x128xf32>, vector<16x128xf32> -> vector<16x128xf32>
    %c2_100 = arith.constant 2 : index
    %c0_101 = arith.constant 0 : index
    %c0_102 = arith.constant 0 : index
    %148 = vector.load %arg6[%c2_100, %c0_101, %c0_102] : memref<4x128x32xf32, #tpu.memory_space<vmem>>, vector<1x128x32xf32>
    %149 = vector.shape_cast %148 : vector<1x128x32xf32> to vector<128x32xf32>
    %cst_103 = arith.constant dense<0.000000e+00> : vector<16x32xf32>
    %150 = tpu.matmul %147, %149, %cst_103 {dimension_numbers = #tpu.dot_dimension_numbers<[1], [0], [0], [1], [0, 0, 1, 1], [], []>} : vector<16x128xf32>, vector<128x32xf32>, vector<16x32xf32> -> vector<16x32xf32>
    %151 = arith.addf %126, %150 : vector<16x32xf32>
    %c3 = arith.constant 3 : index
    %c0_104 = arith.constant 0 : index
    %c0_105 = arith.constant 0 : index
    %152 = vector.load %arg4[%c3, %c0_104, %c0_105] : memref<4x32x128xf32, #tpu.memory_space<vmem>>, vector<1x32x128xf32>
    %153 = vector.shape_cast %152 : vector<1x32x128xf32> to vector<32x128xf32>
    %cst_106 = arith.constant dense<0.000000e+00> : vector<16x128xf32>
    %154 = tpu.matmul %125, %153, %cst_106 {dimension_numbers = #tpu.dot_dimension_numbers<[1], [0], [0], [1], [0, 0, 1, 1], [], []>} : vector<16x32xf32>, vector<32x128xf32>, vector<16x128xf32> -> vector<16x128xf32>
    %cst_107 = arith.constant dense<0.000000e+00> : vector<16x128xf32>
    %155 = tpu.matmul %154, %3, %cst_107 {dimension_numbers = #tpu.dot_dimension_numbers<[1], [1], [0], [0], [0, 0, 1, 0], [], []>} : vector<16x128xf32>, vector<128x128xf32>, vector<16x128xf32> -> vector<16x128xf32>
    %156 = arith.addf %155, %4 : vector<16x128xf32>
    %cst_108 = arith.constant dense<0xFF800000> : vector<16xf32>
    %157 = vector.multi_reduction <maximumf>, %156, %cst_108 [1] : vector<16x128xf32> to vector<16xf32>
    %158 = vector.shape_cast %157 : vector<16xf32> to vector<16x1xf32>
    %159 = vector.broadcast %158 : vector<16x1xf32> to vector<16x128xf32>
    %160 = arith.subf %156, %159 : vector<16x128xf32>
    %161 = math.exp %160 : vector<16x128xf32>
    %cst_109 = arith.constant dense<0.000000e+00> : vector<16xf32>
    %162 = vector.multi_reduction <add>, %161, %cst_109 [1] : vector<16x128xf32> to vector<16xf32>
    %163 = vector.shape_cast %162 : vector<16xf32> to vector<16x1xf32>
    %164 = vector.broadcast %163 : vector<16x1xf32> to vector<16x128xf32>
    %165 = arith.divf %161, %164 : vector<16x128xf32>
    %c1_110 = arith.constant 1 : index
    %c1_111 = arith.constant 1 : index
    %c0_112 = arith.constant 0 : index
    %c0_113 = arith.constant 0 : index
    %166 = vector.load %arg17[%c1_110, %c1_111, %c0_112, %c0_113] : memref<2x2x16x128xf32, #tpu.memory_space<vmem>>, vector<1x1x16x128xf32>
    %167 = vector.shape_cast %166 : vector<1x1x16x128xf32> to vector<16x128xf32>
    %168 = vector.shape_cast %155 : vector<16x128xf32> to vector<1x1x16x128xf32>
    tpu.vector_store %arg17[%c1_110, %c1_111, %c0_112, %c0_113], %168 {strides = array<i32>} : memref<2x2x16x128xf32, #tpu.memory_space<vmem>>, vector<1x1x16x128xf32>,
    %c1_114 = arith.constant 1 : index
    %c1_115 = arith.constant 1 : index
    %c0_116 = arith.constant 0 : index
    %c0_117 = arith.constant 0 : index
    %169 = vector.load %arg16[%c1_114, %c1_115, %c0_116, %c0_117] : memref<2x2x16x128xf32, #tpu.memory_space<vmem>>, vector<1x1x16x128xf32>
    %170 = vector.shape_cast %169 : vector<1x1x16x128xf32> to vector<16x128xf32>
    %171 = vector.shape_cast %165 : vector<16x128xf32> to vector<1x1x16x128xf32>
    tpu.vector_store %arg16[%c1_114, %c1_115, %c0_116, %c0_117], %171 {strides = array<i32>} : memref<2x2x16x128xf32, #tpu.memory_space<vmem>>, vector<1x1x16x128xf32>,
    %cst_118 = arith.constant dense<0.000000e+00> : vector<16x128xf32>
    %172 = tpu.matmul %165, %3, %cst_118 {dimension_numbers = #tpu.dot_dimension_numbers<[1], [0], [0], [1], [0, 0, 1, 1], [], []>} : vector<16x128xf32>, vector<128x128xf32>, vector<16x128xf32> -> vector<16x128xf32>
    %c3_119 = arith.constant 3 : index
    %c0_120 = arith.constant 0 : index
    %c0_121 = arith.constant 0 : index
    %173 = vector.load %arg6[%c3_119, %c0_120, %c0_121] : memref<4x128x32xf32, #tpu.memory_space<vmem>>, vector<1x128x32xf32>
    %174 = vector.shape_cast %173 : vector<1x128x32xf32> to vector<128x32xf32>
    %cst_122 = arith.constant dense<0.000000e+00> : vector<16x32xf32>
    %175 = tpu.matmul %172, %174, %cst_122 {dimension_numbers = #tpu.dot_dimension_numbers<[1], [0], [0], [1], [0, 0, 1, 1], [], []>} : vector<16x128xf32>, vector<128x32xf32>, vector<16x32xf32> -> vector<16x32xf32>
    %176 = arith.addf %151, %175 : vector<16x32xf32>
    %177 = arith.addf %176, %125 : vector<16x32xf32>
    %c1_123 = arith.constant 1 : index
    %c0_124 = arith.constant 0 : index
    %c0_125 = arith.constant 0 : index
    %178 = vector.load %arg7[%c1_123, %c0_124, %c0_125] : memref<2x1x32xf32, #tpu.memory_space<vmem>>, vector<1x1x32xf32>
    %179 = vector.shape_cast %178 : vector<1x1x32xf32> to vector<1x32xf32>
    %c1_126 = arith.constant 1 : index
    %c0_127 = arith.constant 0 : index
    %c0_128 = arith.constant 0 : index
    %180 = vector.load %arg8[%c1_126, %c0_127, %c0_128] : memref<2x1x32xf32, #tpu.memory_space<vmem>>, vector<1x1x32xf32>
    %181 = vector.shape_cast %180 : vector<1x1x32xf32> to vector<1x32xf32>
    %cst_129 = arith.constant dense<0.000000e+00> : vector<16xf32>
    %182 = vector.multi_reduction <add>, %177, %cst_129 [1] : vector<16x32xf32> to vector<16xf32>
    %183 = vector.shape_cast %182 : vector<16xf32> to vector<16x1xf32>
    %cst_130 = arith.constant 3.200000e+01 : f32
    %184 = vector.broadcast %cst_130 : f32 to vector<16x1xf32>
    %185 = arith.divf %183, %184 : vector<16x1xf32>
    %186 = vector.broadcast %185 : vector<16x1xf32> to vector<16x32xf32>
    %187 = arith.subf %177, %186 : vector<16x32xf32>
    %188 = arith.mulf %187, %187 : vector<16x32xf32>
    %cst_131 = arith.constant dense<0.000000e+00> : vector<16xf32>
    %189 = vector.multi_reduction <add>, %188, %cst_131 [1] : vector<16x32xf32> to vector<16xf32>
    %190 = vector.shape_cast %189 : vector<16xf32> to vector<16x1xf32>
    %cst_132 = arith.constant 3.200000e+01 : f32
    %191 = vector.broadcast %cst_132 : f32 to vector<16x1xf32>
    %192 = arith.divf %190, %191 : vector<16x1xf32>
    %193 = vector.broadcast %185 : vector<16x1xf32> to vector<16x32xf32>
    %194 = arith.subf %177, %193 : vector<16x32xf32>
    %cst_133 = arith.constant 9.99999997E-7 : f32
    %195 = vector.broadcast %cst_133 : f32 to vector<16x1xf32>
    %196 = arith.addf %192, %195 : vector<16x1xf32>
    %197 = math.rsqrt %196 : vector<16x1xf32>
    %198 = vector.broadcast %197 : vector<16x1xf32> to vector<16x32xf32>
    %199 = arith.mulf %194, %198 : vector<16x32xf32>
    %200 = vector.broadcast %179 : vector<1x32xf32> to vector<16x32xf32>
    %201 = arith.mulf %199, %200 : vector<16x32xf32>
    %202 = vector.broadcast %181 : vector<1x32xf32> to vector<16x32xf32>
    %203 = arith.addf %201, %202 : vector<16x32xf32>
    %c1_134 = arith.constant 1 : index
    %c0_135 = arith.constant 0 : index
    %c0_136 = arith.constant 0 : index
    %204 = vector.load %arg9[%c1_134, %c0_135, %c0_136] : memref<2x32x64xf32, #tpu.memory_space<vmem>>, vector<1x32x64xf32>
    %205 = vector.shape_cast %204 : vector<1x32x64xf32> to vector<32x64xf32>
    %cst_137 = arith.constant dense<0.000000e+00> : vector<16x64xf32>
    %206 = tpu.matmul %203, %205, %cst_137 {dimension_numbers = #tpu.dot_dimension_numbers<[1], [0], [0], [1], [0, 0, 1, 1], [], []>} : vector<16x32xf32>, vector<32x64xf32>, vector<16x64xf32> -> vector<16x64xf32>
    %c1_138 = arith.constant 1 : index
    %c0_139 = arith.constant 0 : index
    %c0_140 = arith.constant 0 : index
    %207 = vector.load %arg10[%c1_138, %c0_139, %c0_140] : memref<2x1x64xf32, #tpu.memory_space<vmem>>, vector<1x1x64xf32>
    %208 = vector.shape_cast %207 : vector<1x1x64xf32> to vector<1x64xf32>
    %209 = vector.broadcast %208 : vector<1x64xf32> to vector<16x64xf32>
    %210 = arith.addf %206, %209 : vector<16x64xf32>
    %cst_141 = arith.constant 0.000000e+00 : f32
    %211 = vector.broadcast %cst_141 : f32 to vector<16x64xf32>
    %212 = arith.maximumf %210, %211 : vector<16x64xf32>
    %c1_142 = arith.constant 1 : index
    %c0_143 = arith.constant 0 : index
    %c0_144 = arith.constant 0 : index
    %213 = vector.load %arg11[%c1_142, %c0_143, %c0_144] : memref<2x64x32xf32, #tpu.memory_space<vmem>>, vector<1x64x32xf32>
    %214 = vector.shape_cast %213 : vector<1x64x32xf32> to vector<64x32xf32>
    %cst_145 = arith.constant dense<0.000000e+00> : vector<16x32xf32>
    %215 = tpu.matmul %212, %214, %cst_145 {dimension_numbers = #tpu.dot_dimension_numbers<[1], [0], [0], [1], [0, 0, 1, 1], [], []>} : vector<16x64xf32>, vector<64x32xf32>, vector<16x32xf32> -> vector<16x32xf32>
    %c1_146 = arith.constant 1 : index
    %c0_147 = arith.constant 0 : index
    %c0_148 = arith.constant 0 : index
    %216 = vector.load %arg12[%c1_146, %c0_147, %c0_148] : memref<2x1x32xf32, #tpu.memory_space<vmem>>, vector<1x1x32xf32>
    %217 = vector.shape_cast %216 : vector<1x1x32xf32> to vector<1x32xf32>
    %218 = vector.broadcast %217 : vector<1x32xf32> to vector<16x32xf32>
    %219 = arith.addf %215, %218 : vector<16x32xf32>
    %220 = arith.addf %219, %203 : vector<16x32xf32>
    %c1_149 = arith.constant 1 : index
    %c0_150 = arith.constant 0 : index
    %c0_151 = arith.constant 0 : index
    %221 = vector.load %arg13[%c1_149, %c0_150, %c0_151] : memref<2x1x32xf32, #tpu.memory_space<vmem>>, vector<1x1x32xf32>
    %222 = vector.shape_cast %221 : vector<1x1x32xf32> to vector<1x32xf32>
    %c1_152 = arith.constant 1 : index
    %c0_153 = arith.constant 0 : index
    %c0_154 = arith.constant 0 : index
    %223 = vector.load %arg14[%c1_152, %c0_153, %c0_154] : memref<2x1x32xf32, #tpu.memory_space<vmem>>, vector<1x1x32xf32>
    %224 = vector.shape_cast %223 : vector<1x1x32xf32> to vector<1x32xf32>
    %cst_155 = arith.constant dense<0.000000e+00> : vector<16xf32>
    %225 = vector.multi_reduction <add>, %220, %cst_155 [1] : vector<16x32xf32> to vector<16xf32>
    %226 = vector.shape_cast %225 : vector<16xf32> to vector<16x1xf32>
    %cst_156 = arith.constant 3.200000e+01 : f32
    %227 = vector.broadcast %cst_156 : f32 to vector<16x1xf32>
    %228 = arith.divf %226, %227 : vector<16x1xf32>
    %229 = vector.broadcast %228 : vector<16x1xf32> to vector<16x32xf32>
    %230 = arith.subf %220, %229 : vector<16x32xf32>
    %231 = arith.mulf %230, %230 : vector<16x32xf32>
    %cst_157 = arith.constant dense<0.000000e+00> : vector<16xf32>
    %232 = vector.multi_reduction <add>, %231, %cst_157 [1] : vector<16x32xf32> to vector<16xf32>
    %233 = vector.shape_cast %232 : vector<16xf32> to vector<16x1xf32>
    %cst_158 = arith.constant 3.200000e+01 : f32
    %234 = vector.broadcast %cst_158 : f32 to vector<16x1xf32>
    %235 = arith.divf %233, %234 : vector<16x1xf32>
    %236 = vector.broadcast %228 : vector<16x1xf32> to vector<16x32xf32>
    %237 = arith.subf %220, %236 : vector<16x32xf32>
    %cst_159 = arith.constant 9.99999997E-7 : f32
    %238 = vector.broadcast %cst_159 : f32 to vector<16x1xf32>
    %239 = arith.addf %235, %238 : vector<16x1xf32>
    %240 = math.rsqrt %239 : vector<16x1xf32>
    %241 = vector.broadcast %240 : vector<16x1xf32> to vector<16x32xf32>
    %242 = arith.mulf %237, %241 : vector<16x32xf32>
    %243 = vector.broadcast %222 : vector<1x32xf32> to vector<16x32xf32>
    %244 = arith.mulf %242, %243 : vector<16x32xf32>
    %245 = vector.broadcast %224 : vector<1x32xf32> to vector<16x32xf32>
    %246 = arith.addf %244, %245 : vector<16x32xf32>
    %c0_160 = arith.constant 0 : index
    %c0_161 = arith.constant 0 : index
    %247 = vector.load %arg15[%c0_160, %c0_161] : memref<16x32xf32, #tpu.memory_space<vmem>>, vector<16x32xf32>
    tpu.vector_store %arg15[%c0_160, %c0_161], %246 {strides = array<i32>} : memref<16x32xf32, #tpu.memory_space<vmem>>, vector<16x32xf32>,
    return
  }
  func.func @transform_0(%arg0: i32) -> (i32, i32) {
    %c0_i32 = arith.constant 0 : i32
    %c0_i32_0 = arith.constant 0 : i32
    return %arg0, %c0_i32 : i32, i32
  }
  func.func @transform_1(%arg0: i32) -> (i32, i32) {
    %c0_i32 = arith.constant 0 : i32
    %c0_i32_0 = arith.constant 0 : i32
    return %arg0, %c0_i32 : i32, i32
  }
  func.func @transform_2(%arg0: i32) -> (i32, i32) {
    %c0_i32 = arith.constant 0 : i32
    %c0_i32_0 = arith.constant 0 : i32
    %c0_i32_1 = arith.constant 0 : i32
    return %c0_i32, %c0_i32_0 : i32, i32
  }
  func.func @transform_3(%arg0: i32) -> (i32, i32, i32) {
    %c0_i32 = arith.constant 0 : i32
    %c0_i32_0 = arith.constant 0 : i32
    %c0_i32_1 = arith.constant 0 : i32
    %c0_i32_2 = arith.constant 0 : i32
    return %c0_i32, %c0_i32_0, %c0_i32_1 : i32, i32, i32
  }
  func.func @transform_4(%arg0: i32) -> (i32, i32) {
    %c0_i32 = arith.constant 0 : i32
    %c0_i32_0 = arith.constant 0 : i32
    %c0_i32_1 = arith.constant 0 : i32
    return %c0_i32, %c0_i32_0 : i32, i32
  }
  func.func @transform_5(%arg0: i32) -> (i32, i32, i32) {
    %c0_i32 = arith.constant 0 : i32
    %c0_i32_0 = arith.constant 0 : i32
    %c0_i32_1 = arith.constant 0 : i32
    %c0_i32_2 = arith.constant 0 : i32
    return %c0_i32, %c0_i32_0, %c0_i32_1 : i32, i32, i32
  }
  func.func @transform_6(%arg0: i32) -> (i32, i32, i32) {
    %c0_i32 = arith.constant 0 : i32
    %c0_i32_0 = arith.constant 0 : i32
    %c0_i32_1 = arith.constant 0 : i32
    %c0_i32_2 = arith.constant 0 : i32
    return %c0_i32, %c0_i32_0, %c0_i32_1 : i32, i32, i32
  }
  func.func @transform_7(%arg0: i32) -> (i32, i32, i32) {
    %c0_i32 = arith.constant 0 : i32
    %c0_i32_0 = arith.constant 0 : i32
    %c0_i32_1 = arith.constant 0 : i32
    %c0_i32_2 = arith.constant 0 : i32
    return %c0_i32, %c0_i32_0, %c0_i32_1 : i32, i32, i32
  }
  func.func @transform_8(%arg0: i32) -> (i32, i32, i32) {
    %c0_i32 = arith.constant 0 : i32
    %c0_i32_0 = arith.constant 0 : i32
    %c0_i32_1 = arith.constant 0 : i32
    %c0_i32_2 = arith.constant 0 : i32
    return %c0_i32, %c0_i32_0, %c0_i32_1 : i32, i32, i32
  }
  func.func @transform_9(%arg0: i32) -> (i32, i32, i32) {
    %c0_i32 = arith.constant 0 : i32
    %c0_i32_0 = arith.constant 0 : i32
    %c0_i32_1 = arith.constant 0 : i32
    %c0_i32_2 = arith.constant 0 : i32
    return %c0_i32, %c0_i32_0, %c0_i32_1 : i32, i32, i32
  }
  func.func @transform_10(%arg0: i32) -> (i32, i32, i32) {
    %c0_i32 = arith.constant 0 : i32
    %c0_i32_0 = arith.constant 0 : i32
    %c0_i32_1 = arith.constant 0 : i32
    %c0_i32_2 = arith.constant 0 : i32
    return %c0_i32, %c0_i32_0, %c0_i32_1 : i32, i32, i32
  }
  func.func @transform_11(%arg0: i32) -> (i32, i32, i32) {
    %c0_i32 = arith.constant 0 : i32
    %c0_i32_0 = arith.constant 0 : i32
    %c0_i32_1 = arith.constant 0 : i32
    %c0_i32_2 = arith.constant 0 : i32
    return %c0_i32, %c0_i32_0, %c0_i32_1 : i32, i32, i32
  }
  func.func @transform_12(%arg0: i32) -> (i32, i32, i32) {
    %c0_i32 = arith.constant 0 : i32
    %c0_i32_0 = arith.constant 0 : i32
    %c0_i32_1 = arith.constant 0 : i32
    %c0_i32_2 = arith.constant 0 : i32
    return %c0_i32, %c0_i32_0, %c0_i32_1 : i32, i32, i32
  }
  func.func @transform_13(%arg0: i32) -> (i32, i32, i32) {
    %c0_i32 = arith.constant 0 : i32
    %c0_i32_0 = arith.constant 0 : i32
    %c0_i32_1 = arith.constant 0 : i32
    %c0_i32_2 = arith.constant 0 : i32
    return %c0_i32, %c0_i32_0, %c0_i32_1 : i32, i32, i32
  }
  func.func @transform_14(%arg0: i32) -> (i32, i32) {
    %c0_i32 = arith.constant 0 : i32
    %c0_i32_0 = arith.constant 0 : i32
    return %arg0, %c0_i32 : i32, i32
  }
  func.func @transform_15(%arg0: i32) -> (i32, i32, i32, i32) {
    %c0_i32 = arith.constant 0 : i32
    %c0_i32_0 = arith.constant 0 : i32
    %c0_i32_1 = arith.constant 0 : i32
    %c0_i32_2 = arith.constant 0 : i32
    return %c0_i32, %c0_i32_0, %arg0, %c0_i32_1 : i32, i32, i32, i32
  }
  func.func @transform_16(%arg0: i32) -> (i32, i32, i32, i32) {
    %c0_i32 = arith.constant 0 : i32
    %c0_i32_0 = arith.constant 0 : i32
    %c0_i32_1 = arith.constant 0 : i32
    %c0_i32_2 = arith.constant 0 : i32
    return %c0_i32, %c0_i32_0, %arg0, %c0_i32_1 : i32, i32, i32, i32
  }
}

</mosaic_0001>

<llo_original>
// kernel: tpu_custom_call.1
$region0: #{tpu_custom_call.1}
  #allocation0 [shape = 'u32[]', space=smem, size = 0x4, offset = 0x4, fixed_abs, tag = 'smem constant byte address 0x4 - core index']
  #allocation1 [shape = 'u32[72,128]{1,0:T(1,128)}', space=vmem, size = 0x9000, scoped, tag = 'internal scratch']
  %s0 = inlined_call_operand.vmem [shape: f32[16,32], index: 0, kind: input, shape index: {}]
  %s1 = inlined_call_operand.vmem [shape: f32[128,32], index: 1, kind: input, shape index: {}]
  %s2 = inlined_call_operand.vmem [shape: f32[16,128], index: 2, kind: input, shape index: {}]
  %s3 = inlined_call_operand.vmem [shape: f32[4,32,128], index: 3, kind: input, shape index: {}]
  %s4 = inlined_call_operand.vmem [shape: f32[32,128], index: 4, kind: input, shape index: {}]
  %s5 = inlined_call_operand.vmem [shape: f32[4,128,32], index: 5, kind: input, shape index: {}]
  %s6 = inlined_call_operand.vmem [shape: f32[2,1,32], index: 6, kind: input, shape index: {}]
  %s7 = inlined_call_operand.vmem [shape: f32[2,1,32], index: 7, kind: input, shape index: {}]
  %s8 = inlined_call_operand.vmem [shape: f32[2,32,64], index: 8, kind: input, shape index: {}]
  %s9 = inlined_call_operand.vmem [shape: f32[2,1,64], index: 9, kind: input, shape index: {}]
  %s10 = inlined_call_operand.vmem [shape: f32[2,64,32], index: 10, kind: input, shape index: {}]
  %s11 = inlined_call_operand.vmem [shape: f32[2,1,32], index: 11, kind: input, shape index: {}]
  %s12 = inlined_call_operand.vmem [shape: f32[2,1,32], index: 12, kind: input, shape index: {}]
  %s13 = inlined_call_operand.vmem [shape: f32[2,1,32], index: 13, kind: input, shape index: {}]
  %s14 = inlined_call_operand.hbm [shape: f32[16,32], index: 14, kind: output, shape index: {0}]
  %s15 = inlined_call_operand.hbm [shape: f32[2,2,16,128], index: 15, kind: output, shape index: {1}]
  %s16 = inlined_call_operand.hbm [shape: f32[2,2,16,128], index: 16, kind: output, shape index: {2}]
  %17 = xla_tuple %s14, %s15, %s16
  %s18 = sld [smem:[#allocation0]]
  $region82: #{tpu_custom_call.1} parent=0
    _
  %s20 = ssub.s32 1, %s18
  %s21 = scalar_select 0, %s20, %s18
  $region1: #{tpu_custom_call.1} parent=0
    #allocation2 [shape = 'u8[8192]{0}', space=vmem, size = 0x2000, scoped, tag = 'output window, operand 0, single buffered']
    #allocation3 [shape = 's32[1]{0}', space=sflag, size = 0x4, scoped, tag = 'scoped memory for tpu_custom_call.1']
    #allocation4 [shape = 'u8[32768]{0}', space=vmem, size = 0x8000, scoped, tag = 'output window, operand 1, single buffered']
    #allocation5 [shape = 's32[1]{0}', space=sflag, size = 0x4, scoped, tag = 'scoped memory for tpu_custom_call.1']
    #allocation6 [shape = 'u8[32768]{0}', space=vmem, size = 0x8000, scoped, tag = 'output window, operand 2, single buffered']
    %22 = vsyncpa [#allocation3], 0
    %23 = vsyncpa [#allocation5], 0
    // Predicated region
    $region2: #{tpu_custom_call.1} parent=1 // pred_check
      _
    $region3: #{tpu_custom_call.1} parent=1 // pred_check_branch
      %25 = sbr.rel (0) target = $region5
    $region4: #{tpu_custom_call.1} parent=1 // pred_region
      _
    $region5: #{tpu_custom_call.1} parent=1 // pred_fallthru
      _
    // Predicated region
    $region6: #{tpu_custom_call.1} parent=1 // pred_check
      _
    $region7: #{tpu_custom_call.1} parent=1 // pred_check_branch
      %27 = sbr.rel (0) target = $region9
    $region8: #{tpu_custom_call.1} parent=1 // pred_region
      _
    $region9: #{tpu_custom_call.1} parent=1 // pred_fallthru
      _
    // Predicated region
    $region10: #{tpu_custom_call.1} parent=1 // pred_check
      _
    $region11: #{tpu_custom_call.1} parent=1 // pred_check_branch
      %29 = sbr.rel (0) target = $region13
    $region12: #{tpu_custom_call.1} parent=1 // pred_region
      _
    $region13: #{tpu_custom_call.1} parent=1 // pred_fallthru
      _
    // Predicated region
    $region14: #{tpu_custom_call.1} parent=1 // pred_check
      _
    $region15: #{tpu_custom_call.1} parent=1 // pred_check_branch
      %31 = sbr.rel (0) target = $region17
    $region16: #{tpu_custom_call.1} parent=1 // pred_region
      _
    $region17: #{tpu_custom_call.1} parent=1 // pred_fallthru
      _
    // Predicated region
    $region18: #{tpu_custom_call.1} parent=1 // pred_check
      _
    $region19: #{tpu_custom_call.1} parent=1 // pred_check_branch
      %33 = sbr.rel (0) target = $region21
    $region20: #{tpu_custom_call.1} parent=1 // pred_region
      _
    $region21: #{tpu_custom_call.1} parent=1 // pred_fallthru
      _
    // Predicated region
    $region22: #{tpu_custom_call.1} parent=1 // pred_check
      _
    $region23: #{tpu_custom_call.1} parent=1 // pred_check_branch
      %35 = sbr.rel (0) target = $region25
    $region24: #{tpu_custom_call.1} parent=1 // pred_region
      _
    $region25: #{tpu_custom_call.1} parent=1 // pred_fallthru
      _
    // Predicated region
    $region26: #{tpu_custom_call.1} parent=1 // pred_check
      _
    $region27: #{tpu_custom_call.1} parent=1 // pred_check_branch
      %37 = sbr.rel (0) target = $region29
    $region28: #{tpu_custom_call.1} parent=1 // pred_region
      _
    $region29: #{tpu_custom_call.1} parent=1 // pred_fallthru
      _
    // Predicated region
    $region30: #{tpu_custom_call.1} parent=1 // pred_check
      _
    $region31: #{tpu_custom_call.1} parent=1 // pred_check_branch
      %39 = sbr.rel (0) target = $region33
    $region32: #{tpu_custom_call.1} parent=1 // pred_region
      _
    $region33: #{tpu_custom_call.1} parent=1 // pred_fallthru
      _
    // Predicated region
    $region34: #{tpu_custom_call.1} parent=1 // pred_check
      _
    $region35: #{tpu_custom_call.1} parent=1 // pred_check_branch
      %41 = sbr.rel (0) target = $region37
    $region36: #{tpu_custom_call.1} parent=1 // pred_region
      _
    $region37: #{tpu_custom_call.1} parent=1 // pred_fallthru
      _
    // Predicated region
    $region38: #{tpu_custom_call.1} parent=1 // pred_check
      _
    $region39: #{tpu_custom_call.1} parent=1 // pred_check_branch
      %43 = sbr.rel (0) target = $region41
    $region40: #{tpu_custom_call.1} parent=1 // pred_region
      _
    $region41: #{tpu_custom_call.1} parent=1 // pred_fallthru
      _
    // Predicated region
    $region42: #{tpu_custom_call.1} parent=1 // pred_check
      _
    $region43: #{tpu_custom_call.1} parent=1 // pred_check_branch
      %45 = sbr.rel (0) target = $region45
    $region44: #{tpu_custom_call.1} parent=1 // pred_region
      _
    $region45: #{tpu_custom_call.1} parent=1 // pred_fallthru
      _
    // Predicated region
    $region46: #{tpu_custom_call.1} parent=1 // pred_check
      _
    $region47: #{tpu_custom_call.1} parent=1 // pred_check_branch
      %47 = sbr.rel (0) target = $region49
    $region48: #{tpu_custom_call.1} parent=1 // pred_region
      _
    $region49: #{tpu_custom_call.1} parent=1 // pred_fallthru
      _
    // Predicated region
    $region50: #{tpu_custom_call.1} parent=1 // pred_check
      _
    $region51: #{tpu_custom_call.1} parent=1 // pred_check_branch
      %49 = sbr.rel (0) target = $region53
    $region52: #{tpu_custom_call.1} parent=1 // pred_region
      _
    $region53: #{tpu_custom_call.1} parent=1 // pred_fallthru
      _
    // Predicated region
    $region54: #{tpu_custom_call.1} parent=1 // pred_check
      _
    $region55: #{tpu_custom_call.1} parent=1 // pred_check_branch
      %51 = sbr.rel (0) target = $region57
    $region56: #{tpu_custom_call.1} parent=1 // pred_region
      _
    $region57: #{tpu_custom_call.1} parent=1 // pred_fallthru
      _
    %v52 = vld [vmem:[%s0] sm:$0xff]
    %v53 = vld [vmem:[%s0 + $0x8] sm:$0xff]
    %v54 = vld [vmem:[%s1] sm:$0xff]
    %v55 = vld [vmem:[%s1 + $0x8] sm:$0xff]
    %v56 = vld [vmem:[%s1 + $0x10] sm:$0xff]
    %v57 = vld [vmem:[%s1 + $0x18] sm:$0xff]
    %v58 = vld [vmem:[%s1 + $0x20] sm:$0xff]
    %v59 = vld [vmem:[%s1 + $0x28] sm:$0xff]
    %v60 = vld [vmem:[%s1 + $0x30] sm:$0xff]
    %v61 = vld [vmem:[%s1 + $0x38] sm:$0xff]
    %v62 = vld [vmem:[%s1 + $0x40] sm:$0xff]
    %v63 = vld [vmem:[%s1 + $0x48] sm:$0xff]
    %v64 = vld [vmem:[%s1 + $0x50] sm:$0xff]
    %v65 = vld [vmem:[%s1 + $0x58] sm:$0xff]
    %v66 = vld [vmem:[%s1 + $0x60] sm:$0xff]
    %v67 = vld [vmem:[%s1 + $0x68] sm:$0xff]
    %v68 = vld [vmem:[%s1 + $0x70] sm:$0xff]
    %v69 = vld [vmem:[%s1 + $0x78] sm:$0xff]
    %v70 = vld [vmem:[%s4] sm:$0xff]
    %v71 = vld [vmem:[%s4 + $0x8] sm:$0xff]
    %v72 = vld [vmem:[%s4 + $0x10] sm:$0xff]
    %v73 = vld [vmem:[%s4 + $0x18] sm:$0xff]
    %vm74 = vcmask 261120
    %v76 = vsel %vm74, %v54, 0
    %v79 = vsel %vm74, %v55, 0
    %v82 = vsel %vm74, %v56, 0
    %v85 = vsel %vm74, %v57, 0
    %v88 = vsel %vm74, %v58, 0
    %v91 = vsel %vm74, %v59, 0
    %v94 = vsel %vm74, %v60, 0
    %v97 = vsel %vm74, %v61, 0
    %v100 = vsel %vm74, %v62, 0
    %v103 = vsel %vm74, %v63, 0
    %v106 = vsel %vm74, %v64, 0
    %v109 = vsel %vm74, %v65, 0
    %v112 = vsel %vm74, %v66, 0
    %v115 = vsel %vm74, %v67, 0
    %v118 = vsel %vm74, %v68, 0
    %v121 = vsel %vm74, %v69, 0
    %123 = vmatpush.msra.mxu0 0.0
    %124 = vmatpush.msra.mxu0 0.0
    %125 = vmatpush.msra.mxu0 0.0
    %126 = vmatpush.msra.mxu0 0.0
    %127 = vmatpush.msra.mxu0 0.0
    %128 = vmatpush.msra.mxu0 0.0
    %129 = vmatpush.msra.mxu0 0.0
    %130 = vmatpush.msra.mxu0 0.0
    %131 = vmatpush.msra.mxu0 0.0
    %132 = vmatpush.msra.mxu0 0.0
    %133 = vmatpush.msra.mxu0 0.0
    %134 = vmatpush.msra.mxu0 0.0
    %135 = vmatpush.msra.mxu0 %v73
    %136 = vmatpush.msra.mxu0 %v72
    %137 = vmatpush.msra.mxu0 %v71
    %138 = vmatpush.msra.mxu0 %v70
    %139 = vmatmul.f32.gmra.mxu0 %v76
    %v140 = vpop.f32.mrf.mxu0
    %v141 = vadd.f32 0.0, %v140
    %142 = vmatmul.f32.gmra.mxu0 %v79
    %v143 = vpop.f32.mrf.mxu0
    %v144 = vadd.f32 0.0, %v143
    %145 = vmatmul.f32.gmra.mxu0 %v82
    %v146 = vpop.f32.mrf.mxu0
    %v147 = vadd.f32 0.0, %v146
    %148 = vmatmul.f32.gmra.mxu0 %v85
    %v149 = vpop.f32.mrf.mxu0
    %v150 = vadd.f32 0.0, %v149
    %151 = vmatmul.f32.gmra.mxu0 %v88
    %v152 = vpop.f32.mrf.mxu0
    %v153 = vadd.f32 0.0, %v152
    %154 = vmatmul.f32.gmra.mxu0 %v91
    %v155 = vpop.f32.mrf.mxu0
    %v156 = vadd.f32 0.0, %v155
    %157 = vmatmul.f32.gmra.mxu0 %v94
    %v158 = vpop.f32.mrf.mxu0
    %v159 = vadd.f32 0.0, %v158
    %160 = vmatmul.f32.gmra.mxu0 %v97
    %v161 = vpop.f32.mrf.mxu0
    %v162 = vadd.f32 0.0, %v161
    %163 = vmatmul.f32.gmra.mxu0 %v100
    %v164 = vpop.f32.mrf.mxu0
    %v165 = vadd.f32 0.0, %v164
    %166 = vmatmul.f32.gmra.mxu0 %v103
    %v167 = vpop.f32.mrf.mxu0
    %v168 = vadd.f32 0.0, %v167
    %169 = vmatmul.f32.gmra.mxu0 %v106
    %v170 = vpop.f32.mrf.mxu0
    %v171 = vadd.f32 0.0, %v170
    %172 = vmatmul.f32.gmra.mxu0 %v109
    %v173 = vpop.f32.mrf.mxu0
    %v174 = vadd.f32 0.0, %v173
    %175 = vmatmul.f32.gmra.mxu0 %v112
    %v176 = vpop.f32.mrf.mxu0
    %v177 = vadd.f32 0.0, %v176
    %178 = vmatmul.f32.gmra.mxu0 %v115
    %v179 = vpop.f32.mrf.mxu0
    %v180 = vadd.f32 0.0, %v179
    %181 = vmatmul.f32.gmra.mxu0 %v118
    %v182 = vpop.f32.mrf.mxu0
    %v183 = vadd.f32 0.0, %v182
    %184 = vmatmul.f32.gmra.mxu0 %v121
    %v185 = vpop.f32.mrf.mxu0
    %v186 = vadd.f32 0.0, %v185
    %187 = vdwg.mxu0
    %v188 = vld [vmem:[%s2] sm:$0xff]
    %v189 = vld [vmem:[%s2 + $0x8] sm:$0xff]
    %v190 = vld [vmem:[%s3] sm:$0xff]
    %v191 = vld [vmem:[%s3 + $0x8] sm:$0xff]
    %v192 = vld [vmem:[%s3 + $0x10] sm:$0xff]
    %v193 = vld [vmem:[%s3 + $0x18] sm:$0xff]
    %v195 = vsel %vm74, %v52, 0
    %v198 = vsel %vm74, %v53, 0
    %200 = vmatpush.msra.mxu0 0.0
    %201 = vmatpush.msra.mxu0 0.0
    %202 = vmatpush.msra.mxu0 0.0
    %203 = vmatpush.msra.mxu0 0.0
    %204 = vmatpush.msra.mxu0 0.0
    %205 = vmatpush.msra.mxu0 0.0
    %206 = vmatpush.msra.mxu0 0.0
    %207 = vmatpush.msra.mxu0 0.0
    %208 = vmatpush.msra.mxu0 0.0
    %209 = vmatpush.msra.mxu0 0.0
    %210 = vmatpush.msra.mxu0 0.0
    %211 = vmatpush.msra.mxu0 0.0
    %212 = vmatpush.msra.mxu0 %v193
    %213 = vmatpush.msra.mxu0 %v192
    %214 = vmatpush.msra.mxu0 %v191
    %215 = vmatpush.msra.mxu0 %v190
    %216 = vmatmul.f32.gmra.mxu0 %v195
    %v217 = vpop.f32.mrf.mxu0
    %v218 = vadd.f32 0.0, %v217
    %219 = vmatmul.f32.gmra.mxu0 %v198
    %v220 = vpop.f32.mrf.mxu0
    %v221 = vadd.f32 0.0, %v220
    %222 = vdwg.mxu0
    %223 = vmatpush.xpose.msra.mxu0 %v186
    %224 = vmatpush.xpose.msra.mxu0 %v183
    %225 = vmatpush.xpose.msra.mxu0 %v180
    %226 = vmatpush.xpose.msra.mxu0 %v177
    %227 = vmatpush.xpose.msra.mxu0 %v174
    %228 = vmatpush.xpose.msra.mxu0 %v171
    %229 = vmatpush.xpose.msra.mxu0 %v168
    %230 = vmatpush.xpose.msra.mxu0 %v165
    %231 = vmatpush.xpose.msra.mxu0 %v162
    %232 = vmatpush.xpose.msra.mxu0 %v159
    %233 = vmatpush.xpose.msra.mxu0 %v156
    %234 = vmatpush.xpose.msra.mxu0 %v153
    %235 = vmatpush.xpose.msra.mxu0 %v150
    %236 = vmatpush.xpose.msra.mxu0 %v147
    %237 = vmatpush.xpose.msra.mxu0 %v144
    %238 = vmatpush.xpose.msra.mxu0 %v141
    %239 = vmatmul.f32.gmra.mxu0 %v218
    %v240 = vpop.f32.mrf.mxu0
    %v241 = vadd.f32 0.0, %v240
    %242 = vmatmul.f32.gmra.mxu0 %v221
    %v243 = vpop.f32.mrf.mxu0
    %v244 = vadd.f32 0.0, %v243
    %245 = vdwg.mxu0
    %v246 = vadd.f32 %v241, %v188
    %v247 = vadd.f32 %v244, %v189
    %248 = vmax.xlane.f32.xlu0 %v246
    %v249 = vpop.xlane.xlu0 %248
    %250 = vmax.xlane.f32.xlu0 %v247
    %v251 = vpop.xlane.xlu0 %250
    %v252 = vsub.f32 %v246, %v249
    %v253 = vsub.f32 %v247, %v251
    %v254 = vmul.f32 %v252, 1.442695
    %v255 = vpow.pop %v254
    %v256 = vmul.f32 %v253, 1.442695
    %v257 = vpow.pop %v256
    %258 = vadd.xlane.f32.xlu0 %v255
    %v259 = vpop.xlane.xlu0 %258
    %260 = vadd.xlane.f32.xlu0 %v257
    %v261 = vpop.xlane.xlu0 %260
    %v262 = vrcp.pop %v259
    %v263 = vmul.f32 %v259, %v262
    %v264 = vsub.f32 1.0, %v263
    %v265 = vmul.f32 %v262, %v264
    %v266 = vadd.f32 %v262, %v265
    %vm267 = vweird.f32 %v259
    %vm268 = vweird.f32 %v262
    %vm269 = vmor %vm267, %vm268
    %v270 = vsel %vm269, %v262, %v266
    %v271 = vand.u32 2147483647, %v259
    %vm272 = vcmp.eq.f32.partialorder %v271, 8.507059e+37
    %v273 = vand.u32 %v259, 2147483648
    %v274 = vor.u32 1.1754944e-38, %v273
    %v275 = vsel %vm272, %v274, %v270
    %v276 = vmul.f32 %v255, %v275
    %v277 = vrcp.pop %v261
    %v278 = vmul.f32 %v261, %v277
    %v279 = vsub.f32 1.0, %v278
    %v280 = vmul.f32 %v277, %v279
    %v281 = vadd.f32 %v277, %v280
    %vm282 = vweird.f32 %v261
    %vm283 = vweird.f32 %v277
    %vm284 = vmor %vm282, %vm283
    %v285 = vsel %vm284, %v277, %v281
    %v286 = vand.u32 2147483647, %v261
    %vm287 = vcmp.eq.f32.partialorder %v286, 8.507059e+37
    %v288 = vand.u32 %v261, 2147483648
    %v289 = vor.u32 1.1754944e-38, %v288
    %v290 = vsel %vm287, %v289, %v285
    %v291 = vmul.f32 %v257, %v290
    %292 = vst [vmem:[#allocation6] sm:$0xff] %v241
    %293 = vst [vmem:[#allocation6 + $0x8] sm:$0xff] %v244
    %294 = vst [vmem:[#allocation4] sm:$0xff] %v276
    %295 = vst [vmem:[#allocation4 + $0x8] sm:$0xff] %v291
    %296 = vmatpush.msra.mxu0 %v186
    %297 = vmatpush.msra.mxu0 %v183
    %298 = vmatpush.msra.mxu0 %v180
    %299 = vmatpush.msra.mxu0 %v177
    %300 = vmatpush.msra.mxu0 %v174
    %301 = vmatpush.msra.mxu0 %v171
    %302 = vmatpush.msra.mxu0 %v168
    %303 = vmatpush.msra.mxu0 %v165
    %304 = vmatpush.msra.mxu0 %v162
    %305 = vmatpush.msra.mxu0 %v159
    %306 = vmatpush.msra.mxu0 %v156
    %307 = vmatpush.msra.mxu0 %v153
    %308 = vmatpush.msra.mxu0 %v150
    %309 = vmatpush.msra.mxu0 %v147
    %310 = vmatpush.msra.mxu0 %v144
    %311 = vmatpush.msra.mxu0 %v141
    %312 = vmatmul.f32.gmra.mxu0 %v276
    %v313 = vpop.f32.mrf.mxu0
    %v314 = vadd.f32 0.0, %v313
    %315 = vmatmul.f32.gmra.mxu0 %v291
    %v316 = vpop.f32.mrf.mxu0
    %v317 = vadd.f32 0.0, %v316
    %318 = vdwg.mxu0
    %v319 = vld [vmem:[%s5] sm:$0xff]
    %v320 = vld [vmem:[%s5 + $0x8] sm:$0xff]
    %v321 = vld [vmem:[%s5 + $0x10] sm:$0xff]
    %v322 = vld [vmem:[%s5 + $0x18] sm:$0xff]
    %v323 = vld [vmem:[%s5 + $0x20] sm:$0xff]
    %v324 = vld [vmem:[%s5 + $0x28] sm:$0xff]
    %v325 = vld [vmem:[%s5 + $0x30] sm:$0xff]
    %v326 = vld [vmem:[%s5 + $0x38] sm:$0xff]
    %v327 = vld [vmem:[%s5 + $0x40] sm:$0xff]
    %v328 = vld [vmem:[%s5 + $0x48] sm:$0xff]
    %v329 = vld [vmem:[%s5 + $0x50] sm:$0xff]
    %v330 = vld [vmem:[%s5 + $0x58] sm:$0xff]
    %v331 = vld [vmem:[%s5 + $0x60] sm:$0xff]
    %v332 = vld [vmem:[%s5 + $0x68] sm:$0xff]
    %v333 = vld [vmem:[%s5 + $0x70] sm:$0xff]
    %v334 = vld [vmem:[%s5 + $0x78] sm:$0xff]
    %s335 = scalar_lea.vmem %s3, 32
    %v336 = vld [vmem:[%s335] sm:$0xff]
    %v337 = vld [vmem:[%s335 + $0x8] sm:$0xff]
    %v338 = vld [vmem:[%s335 + $0x10] sm:$0xff]
    %v339 = vld [vmem:[%s335 + $0x18] sm:$0xff]
    %340 = vmatpush.msra.mxu0 0.0
    %341 = vmatpush.msra.mxu0 0.0
    %342 = vmatpush.msra.mxu0 0.0
    %343 = vmatpush.msra.mxu0 0.0
    %344 = vmatpush.msra.mxu0 0.0
    %345 = vmatpush.msra.mxu0 0.0
    %346 = vmatpush.msra.mxu0 0.0
    %347 = vmatpush.msra.mxu0 0.0
    %348 = vmatpush.msra.mxu0 0.0
    %349 = vmatpush.msra.mxu0 0.0
    %350 = vmatpush.msra.mxu0 0.0
    %351 = vmatpush.msra.mxu0 0.0
    %352 = vmatpush.msra.mxu0 %v339
    %353 = vmatpush.msra.mxu0 %v338
    %354 = vmatpush.msra.mxu0 %v337
    %355 = vmatpush.msra.mxu0 %v336
    %356 = vmatmul.f32.gmra.mxu0 %v195
    %v357 = vpop.f32.mrf.mxu0
    %v358 = vadd.f32 0.0, %v357
    %359 = vmatmul.f32.gmra.mxu0 %v198
    %v360 = vpop.f32.mrf.mxu0
    %v361 = vadd.f32 0.0, %v360
    %362 = vdwg.mxu0
    %363 = vmatpush.xpose.msra.mxu0 %v186
    %364 = vmatpush.xpose.msra.mxu0 %v183
    %365 = vmatpush.xpose.msra.mxu0 %v180
    %366 = vmatpush.xpose.msra.mxu0 %v177
    %367 = vmatpush.xpose.msra.mxu0 %v174
    %368 = vmatpush.xpose.msra.mxu0 %v171
    %369 = vmatpush.xpose.msra.mxu0 %v168
    %370 = vmatpush.xpose.msra.mxu0 %v165
    %371 = vmatpush.xpose.msra.mxu0 %v162
    %372 = vmatpush.xpose.msra.mxu0 %v159
    %373 = vmatpush.xpose.msra.mxu0 %v156
    %374 = vmatpush.xpose.msra.mxu0 %v153
    %375 = vmatpush.xpose.msra.mxu0 %v150
    %376 = vmatpush.xpose.msra.mxu0 %v147
    %377 = vmatpush.xpose.msra.mxu0 %v144
    %378 = vmatpush.xpose.msra.mxu0 %v141
    %379 = vmatmul.f32.gmra.mxu0 %v358
    %v380 = vpop.f32.mrf.mxu0
    %v381 = vadd.f32 0.0, %v380
    %382 = vmatmul.f32.gmra.mxu0 %v361
    %v383 = vpop.f32.mrf.mxu0
    %v384 = vadd.f32 0.0, %v383
    %385 = vdwg.mxu0
    %v386 = vadd.f32 %v381, %v188
    %v387 = vadd.f32 %v384, %v189
    %388 = vmax.xlane.f32.xlu0 %v386
    %v389 = vpop.xlane.xlu0 %388
    %390 = vmax.xlane.f32.xlu0 %v387
    %v391 = vpop.xlane.xlu0 %390
    %v392 = vsub.f32 %v386, %v389
    %v393 = vsub.f32 %v387, %v391
    %v394 = vmul.f32 %v392, 1.442695
    %v395 = vpow.pop %v394
    %v396 = vmul.f32 %v393, 1.442695
    %v397 = vpow.pop %v396
    %398 = vadd.xlane.f32.xlu0 %v395
    %v399 = vpop.xlane.xlu0 %398
    %400 = vadd.xlane.f32.xlu0 %v397
    %v401 = vpop.xlane.xlu0 %400
    %v402 = vrcp.pop %v399
    %v403 = vmul.f32 %v399, %v402
    %v404 = vsub.f32 1.0, %v403
    %v405 = vmul.f32 %v402, %v404
    %v406 = vadd.f32 %v402, %v405
    %vm407 = vweird.f32 %v399
    %vm408 = vweird.f32 %v402
    %vm409 = vmor %vm407, %vm408
    %v410 = vsel %vm409, %v402, %v406
    %v411 = vand.u32 2147483647, %v399
    %vm412 = vcmp.eq.f32.partialorder %v411, 8.507059e+37
    %v413 = vand.u32 %v399, 2147483648
    %v414 = vor.u32 1.1754944e-38, %v413
    %v415 = vsel %vm412, %v414, %v410
    %v416 = vmul.f32 %v395, %v415
    %v417 = vrcp.pop %v401
    %v418 = vmul.f32 %v401, %v417
    %v419 = vsub.f32 1.0, %v418
    %v420 = vmul.f32 %v417, %v419
    %v421 = vadd.f32 %v417, %v420
    %vm422 = vweird.f32 %v401
    %vm423 = vweird.f32 %v417
    %vm424 = vmor %vm422, %vm423
    %v425 = vsel %vm424, %v417, %v421
    %v426 = vand.u32 2147483647, %v401
    %vm427 = vcmp.eq.f32.partialorder %v426, 8.507059e+37
    %v428 = vand.u32 %v401, 2147483648
    %v429 = vor.u32 1.1754944e-38, %v428
    %v430 = vsel %vm427, %v429, %v425
    %v431 = vmul.f32 %v397, %v430
    %s432 = scalar_lea.vmem [#allocation6], 16
    %433 = vst [vmem:[%s432] sm:$0xff] %v381
    %434 = vst [vmem:[%s432 + $0x8] sm:$0xff] %v384
    %s435 = scalar_lea.vmem [#allocation4], 16
    %436 = vst [vmem:[%s435] sm:$0xff] %v416
    %437 = vst [vmem:[%s435 + $0x8] sm:$0xff] %v431
    %438 = vmatpush.msra.mxu0 %v186
    %439 = vmatpush.msra.mxu0 %v183
    %440 = vmatpush.msra.mxu0 %v180
    %441 = vmatpush.msra.mxu0 %v177
    %442 = vmatpush.msra.mxu0 %v174
    %443 = vmatpush.msra.mxu0 %v171
    %444 = vmatpush.msra.mxu0 %v168
    %445 = vmatpush.msra.mxu0 %v165
    %446 = vmatpush.msra.mxu0 %v162
    %447 = vmatpush.msra.mxu0 %v159
    %448 = vmatpush.msra.mxu0 %v156
    %449 = vmatpush.msra.mxu0 %v153
    %450 = vmatpush.msra.mxu0 %v150
    %451 = vmatpush.msra.mxu0 %v147
    %452 = vmatpush.msra.mxu0 %v144
    %453 = vmatpush.msra.mxu0 %v141
    %454 = vmatmul.f32.gmra.mxu0 %v416
    %v455 = vpop.f32.mrf.mxu0
    %v456 = vadd.f32 0.0, %v455
    %457 = vmatmul.f32.gmra.mxu0 %v431
    %v458 = vpop.f32.mrf.mxu0
    %v459 = vadd.f32 0.0, %v458
    %460 = vdwg.mxu0
    %s461 = scalar_lea.vmem %s5, 128
    %v462 = vld [vmem:[%s461] sm:$0xff]
    %v463 = vld [vmem:[%s461 + $0x8] sm:$0xff]
    %v464 = vld [vmem:[%s461 + $0x10] sm:$0xff]
    %v465 = vld [vmem:[%s461 + $0x18] sm:$0xff]
    %v466 = vld [vmem:[%s461 + $0x20] sm:$0xff]
    %v467 = vld [vmem:[%s461 + $0x28] sm:$0xff]
    %v468 = vld [vmem:[%s461 + $0x30] sm:$0xff]
    %v469 = vld [vmem:[%s461 + $0x38] sm:$0xff]
    %v470 = vld [vmem:[%s461 + $0x40] sm:$0xff]
    %v471 = vld [vmem:[%s461 + $0x48] sm:$0xff]
    %v472 = vld [vmem:[%s461 + $0x50] sm:$0xff]
    %v473 = vld [vmem:[%s461 + $0x58] sm:$0xff]
    %v474 = vld [vmem:[%s461 + $0x60] sm:$0xff]
    %v475 = vld [vmem:[%s461 + $0x68] sm:$0xff]
    %v476 = vld [vmem:[%s461 + $0x70] sm:$0xff]
    %v477 = vld [vmem:[%s461 + $0x78] sm:$0xff]
    %478 = vmatpush.msra.mxu0 %v477
    %479 = vmatpush.msra.mxu0 %v476
    %480 = vmatpush.msra.mxu0 %v475
    %481 = vmatpush.msra.mxu0 %v474
    %482 = vmatpush.msra.mxu0 %v473
    %483 = vmatpush.msra.mxu0 %v472
    %484 = vmatpush.msra.mxu0 %v471
    %485 = vmatpush.msra.mxu0 %v470
    %486 = vmatpush.msra.mxu0 %v469
    %487 = vmatpush.msra.mxu0 %v468
    %488 = vmatpush.msra.mxu0 %v467
    %489 = vmatpush.msra.mxu0 %v466
    %490 = vmatpush.msra.mxu0 %v465
    %491 = vmatpush.msra.mxu0 %v464
    %492 = vmatpush.msra.mxu0 %v463
    %493 = vmatpush.msra.mxu0 %v462
    %494 = vmatmul.f32.gmra.mxu0 %v456
    %v495 = vpop.f32.mrf.mxu0
    %v496 = vadd.f32 0.0, %v495
    %497 = vmatmul.f32.gmra.mxu0 %v459
    %v498 = vpop.f32.mrf.mxu0
    %v499 = vadd.f32 0.0, %v498
    %500 = vdwg.mxu0
    %501 = vmatpush.msra.mxu0 %v334
    %502 = vmatpush.msra.mxu0 %v333
    %503 = vmatpush.msra.mxu0 %v332
    %504 = vmatpush.msra.mxu0 %v331
    %505 = vmatpush.msra.mxu0 %v330
    %506 = vmatpush.msra.mxu0 %v329
    %507 = vmatpush.msra.mxu0 %v328
    %508 = vmatpush.msra.mxu0 %v327
    %509 = vmatpush.msra.mxu0 %v326
    %510 = vmatpush.msra.mxu0 %v325
    %511 = vmatpush.msra.mxu0 %v324
    %512 = vmatpush.msra.mxu0 %v323
    %513 = vmatpush.msra.mxu0 %v322
    %514 = vmatpush.msra.mxu0 %v321
    %515 = vmatpush.msra.mxu0 %v320
    %516 = vmatpush.msra.mxu0 %v319
    %517 = vmatmul.f32.gmra.mxu0 %v314
    %v518 = vpop.f32.mrf.mxu0
    %v519 = vadd.f32 %v496, %v518
    %520 = vmatmul.f32.gmra.mxu0 %v317
    %v521 = vpop.f32.mrf.mxu0
    %v522 = vadd.f32 %v499, %v521
    %523 = vdwg.mxu0
    %v524 = vadd.f32 %v519, %v52
    %v525 = vadd.f32 %v522, %v53
    %v526 = vld [vmem:[%s6] sm:$0x1]
    %v527 = vld [vmem:[%s7] sm:$0x1]
    %v528 = vsel %vm74, %v524, 0.0
    %529 = vadd.xlane.f32.xlu0 %v528
    %v530 = vpop.xlane.xlu0 %529
    %v531 = vsel %vm74, %v525, 0.0
    %532 = vadd.xlane.f32.xlu0 %v531
    %v533 = vpop.xlane.xlu0 %532
    %v534 = vrcp.pop 32.0
    %v535 = vmul.f32 32.0, %v534
    %v536 = vsub.f32 1.0, %v535
    %v537 = vmul.f32 %v534, %v536
    %v538 = vadd.f32 %v534, %v537
    %vm539 = vweird.f32 %v534
    %v540 = vsel %vm539, %v534, %v538
    %v541 = vmul.f32 %v530, %v540
    %v542 = vmul.f32 %v533, %v540
    %v543 = vsub.f32 %v524, %v541
    %v544 = vsub.f32 %v525, %v542
    %v545 = vmul.f32 %v543, %v543
    %v546 = vmul.f32 %v544, %v544
    %v547 = vsel %vm74, %v545, 0.0
    %548 = vadd.xlane.f32.xlu0 %v547
    %v549 = vpop.xlane.xlu0 %548
    %v550 = vsel %vm74, %v546, 0.0
    %551 = vadd.xlane.f32.xlu0 %v550
    %v552 = vpop.xlane.xlu0 %551
    %v553 = vmul.f32 %v549, %v540
    %v554 = vmul.f32 %v552, %v540
    %v555 = vadd.f32 %v553, 1e-06
    %v556 = vadd.f32 %v554, 1e-06
    %v557 = vrsqrt.pop %v555
    %v558 = vmul.f32 %v557, %v555
    %v559 = vmul.f32 %v558, %v557
    %v560 = vmul.f32 0.5, %v559
    %v561 = vsub.f32 1.5, %v560
    %v562 = vmul.f32 %v557, %v561
    %vm563 = vweird.f32 %v555
    %vm564 = vweird.f32 %v557
    %vm565 = vmor %vm563, %vm564
    %v566 = vsel %vm565, %v557, %v562
    %v567 = vrsqrt.pop %v556
    %v568 = vmul.f32 %v567, %v556
    %v569 = vmul.f32 %v568, %v567
    %v570 = vmul.f32 0.5, %v569
    %v571 = vsub.f32 1.5, %v570
    %v572 = vmul.f32 %v567, %v571
    %vm573 = vweird.f32 %v556
    %vm574 = vweird.f32 %v567
    %vm575 = vmor %vm573, %vm574
    %v576 = vsel %vm575, %v567, %v572
    %v577 = vmul.f32 %v543, %v566
    %v578 = vmul.f32 %v544, %v576
    %v580 = vperm.slane %v526, 0
    %v582 = vmul.f32 %v577, %v580
    %v583 = vmul.f32 %v578, %v580
    %v585 = vperm.slane %v527, 0
    %v587 = vadd.f32 %v582, %v585
    %v588 = vadd.f32 %v583, %v585
    %v589 = vld [vmem:[%s8] sm:$0xff]
    %v590 = vld [vmem:[%s8 + $0x8] sm:$0xff]
    %v591 = vld [vmem:[%s8 + $0x10] sm:$0xff]
    %v592 = vld [vmem:[%s8 + $0x18] sm:$0xff]
    %v593 = vld [vmem:[%s9] sm:$0x1]
    %v595 = vperm.slane %v593, 0
    %v598 = vsel %vm74, %v587, 0
    %v601 = vsel %vm74, %v588, 0
    %603 = vmatpush.msra.mxu0 0.0
    %604 = vmatpush.msra.mxu0 0.0
    %605 = vmatpush.msra.mxu0 0.0
    %606 = vmatpush.msra.mxu0 0.0
    %607 = vmatpush.msra.mxu0 0.0
    %608 = vmatpush.msra.mxu0 0.0
    %609 = vmatpush.msra.mxu0 0.0
    %610 = vmatpush.msra.mxu0 0.0
    %611 = vmatpush.msra.mxu0 0.0
    %612 = vmatpush.msra.mxu0 0.0
    %613 = vmatpush.msra.mxu0 0.0
    %614 = vmatpush.msra.mxu0 0.0
    %615 = vmatpush.msra.mxu0 %v592
    %616 = vmatpush.msra.mxu0 %v591
    %617 = vmatpush.msra.mxu0 %v590
    %618 = vmatpush.msra.mxu0 %v589
    %619 = vmatmul.f32.gmra.mxu0 %v598
    %v620 = vpop.f32.mrf.mxu0
    %v621 = vadd.f32 %v595, %v620
    %622 = vmatmul.f32.gmra.mxu0 %v601
    %v623 = vpop.f32.mrf.mxu0
    %v624 = vadd.f32 %v595, %v623
    %625 = vdwg.mxu0
    %v626 = vmax.f32 %v621, 0.0
    %v627 = vmax.f32 %v624, 0.0
    %v628 = vld [vmem:[%s10] sm:$0xff]
    %v629 = vld [vmem:[%s10 + $0x8] sm:$0xff]
    %v630 = vld [vmem:[%s10 + $0x10] sm:$0xff]
    %v631 = vld [vmem:[%s10 + $0x18] sm:$0xff]
    %v632 = vld [vmem:[%s10 + $0x20] sm:$0xff]
    %v633 = vld [vmem:[%s10 + $0x28] sm:$0xff]
    %v634 = vld [vmem:[%s10 + $0x30] sm:$0xff]
    %v635 = vld [vmem:[%s10 + $0x38] sm:$0xff]
    %v636 = vld [vmem:[%s11] sm:$0x1]
    %v638 = vperm.slane %v636, 0
    %vm640 = vcmask 523264
    %v642 = vsel %vm640, %v626, 0
    %v645 = vsel %vm640, %v627, 0
    %647 = vmatpush.msra.mxu0 0.0
    %648 = vmatpush.msra.mxu0 0.0
    %649 = vmatpush.msra.mxu0 0.0
    %650 = vmatpush.msra.mxu0 0.0
    %651 = vmatpush.msra.mxu0 0.0
    %652 = vmatpush.msra.mxu0 0.0
    %653 = vmatpush.msra.mxu0 0.0
    %654 = vmatpush.msra.mxu0 0.0
    %655 = vmatpush.msra.mxu0 %v635
    %656 = vmatpush.msra.mxu0 %v634
    %657 = vmatpush.msra.mxu0 %v633
    %658 = vmatpush.msra.mxu0 %v632
    %659 = vmatpush.msra.mxu0 %v631
    %660 = vmatpush.msra.mxu0 %v630
    %661 = vmatpush.msra.mxu0 %v629
    %662 = vmatpush.msra.mxu0 %v628
    %663 = vmatmul.f32.gmra.mxu0 %v642
    %v664 = vpop.f32.mrf.mxu0
    %v665 = vadd.f32 %v638, %v664
    %666 = vmatmul.f32.gmra.mxu0 %v645
    %v667 = vpop.f32.mrf.mxu0
    %v668 = vadd.f32 %v638, %v667
    %669 = vdwg.mxu0
    %v670 = vadd.f32 %v665, %v587
    %v671 = vadd.f32 %v668, %v588
    %v672 = vld [vmem:[%s12] sm:$0x1]
    %v673 = vld [vmem:[%s13] sm:$0x1]
    %v674 = vsel %vm74, %v670, 0.0
    %675 = vadd.xlane.f32.xlu0 %v674
    %v676 = vpop.xlane.xlu0 %675
    %v677 = vsel %vm74, %v671, 0.0
    %678 = vadd.xlane.f32.xlu0 %v677
    %v679 = vpop.xlane.xlu0 %678
    %v680 = vmul.f32 %v676, %v540
    %v681 = vmul.f32 %v679, %v540
    %v682 = vsub.f32 %v670, %v680
    %v683 = vsub.f32 %v671, %v681
    %v684 = vmul.f32 %v682, %v682
    %v685 = vmul.f32 %v683, %v683
    %v686 = vsel %vm74, %v684, 0.0
    %687 = vadd.xlane.f32.xlu0 %v686
    %v688 = vpop.xlane.xlu0 %687
    %v689 = vsel %vm74, %v685, 0.0
    %690 = vadd.xlane.f32.xlu0 %v689
    %v691 = vpop.xlane.xlu0 %690
    %v692 = vmul.f32 %v688, %v540
    %v693 = vmul.f32 %v691, %v540
    %v694 = vadd.f32 %v692, 1e-06
    %v695 = vadd.f32 %v693, 1e-06
    %v696 = vrsqrt.pop %v694
    %v697 = vmul.f32 %v696, %v694
    %v698 = vmul.f32 %v697, %v696
    %v699 = vmul.f32 0.5, %v698
    %v700 = vsub.f32 1.5, %v699
    %v701 = vmul.f32 %v696, %v700
    %vm702 = vweird.f32 %v694
    %vm703 = vweird.f32 %v696
    %vm704 = vmor %vm702, %vm703
    %v705 = vsel %vm704, %v696, %v701
    %v706 = vrsqrt.pop %v695
    %v707 = vmul.f32 %v706, %v695
    %v708 = vmul.f32 %v707, %v706
    %v709 = vmul.f32 0.5, %v708
    %v710 = vsub.f32 1.5, %v709
    %v711 = vmul.f32 %v706, %v710
    %vm712 = vweird.f32 %v695
    %vm713 = vweird.f32 %v706
    %vm714 = vmor %vm712, %vm713
    %v715 = vsel %vm714, %v706, %v711
    %v716 = vmul.f32 %v682, %v705
    %v717 = vmul.f32 %v683, %v715
    %v719 = vperm.slane %v672, 0
    %v721 = vmul.f32 %v716, %v719
    %v722 = vmul.f32 %v717, %v719
    %v724 = vperm.slane %v673, 0
    %v726 = vadd.f32 %v721, %v724
    %v727 = vadd.f32 %v722, %v724
    %s728 = scalar_lea.vmem %s3, 64
    %v729 = vld [vmem:[%s728] sm:$0xff]
    %v730 = vld [vmem:[%s728 + $0x8] sm:$0xff]
    %v731 = vld [vmem:[%s728 + $0x10] sm:$0xff]
    %v732 = vld [vmem:[%s728 + $0x18] sm:$0xff]
    %v734 = vsel %vm74, %v726, 0
    %v737 = vsel %vm74, %v727, 0
    %739 = vmatpush.msra.mxu0 0.0
    %740 = vmatpush.msra.mxu0 0.0
    %741 = vmatpush.msra.mxu0 0.0
    %742 = vmatpush.msra.mxu0 0.0
    %743 = vmatpush.msra.mxu0 0.0
    %744 = vmatpush.msra.mxu0 0.0
    %745 = vmatpush.msra.mxu0 0.0
    %746 = vmatpush.msra.mxu0 0.0
    %747 = vmatpush.msra.mxu0 0.0
    %748 = vmatpush.msra.mxu0 0.0
    %749 = vmatpush.msra.mxu0 0.0
    %750 = vmatpush.msra.mxu0 0.0
    %751 = vmatpush.msra.mxu0 %v732
    %752 = vmatpush.msra.mxu0 %v731
    %753 = vmatpush.msra.mxu0 %v730
    %754 = vmatpush.msra.mxu0 %v729
    %755 = vmatmul.f32.gmra.mxu0 %v734
    %v756 = vpop.f32.mrf.mxu0
    %v757 = vadd.f32 0.0, %v756
    %758 = vmatmul.f32.gmra.mxu0 %v737
    %v759 = vpop.f32.mrf.mxu0
    %v760 = vadd.f32 0.0, %v759
    %761 = vdwg.mxu0
    %762 = vmatpush.xpose.msra.mxu0 %v186
    %763 = vmatpush.xpose.msra.mxu0 %v183
    %764 = vmatpush.xpose.msra.mxu0 %v180
    %765 = vmatpush.xpose.msra.mxu0 %v177
    %766 = vmatpush.xpose.msra.mxu0 %v174
    %767 = vmatpush.xpose.msra.mxu0 %v171
    %768 = vmatpush.xpose.msra.mxu0 %v168
    %769 = vmatpush.xpose.msra.mxu0 %v165
    %770 = vmatpush.xpose.msra.mxu0 %v162
    %771 = vmatpush.xpose.msra.mxu0 %v159
    %772 = vmatpush.xpose.msra.mxu0 %v156
    %773 = vmatpush.xpose.msra.mxu0 %v153
    %774 = vmatpush.xpose.msra.mxu0 %v150
    %775 = vmatpush.xpose.msra.mxu0 %v147
    %776 = vmatpush.xpose.msra.mxu0 %v144
    %777 = vmatpush.xpose.msra.mxu0 %v141
    %778 = vmatmul.f32.gmra.mxu0 %v757
    %v779 = vpop.f32.mrf.mxu0
    %v780 = vadd.f32 0.0, %v779
    %781 = vmatmul.f32.gmra.mxu0 %v760
    %v782 = vpop.f32.mrf.mxu0
    %v783 = vadd.f32 0.0, %v782
    %784 = vdwg.mxu0
    %v785 = vadd.f32 %v780, %v188
    %v786 = vadd.f32 %v783, %v189
    %787 = vmax.xlane.f32.xlu0 %v785
    %v788 = vpop.xlane.xlu0 %787
    %789 = vmax.xlane.f32.xlu0 %v786
    %v790 = vpop.xlane.xlu0 %789
    %v791 = vsub.f32 %v785, %v788
    %v792 = vsub.f32 %v786, %v790
    %v793 = vmul.f32 %v791, 1.442695
    %v794 = vpow.pop %v793
    %v795 = vmul.f32 %v792, 1.442695
    %v796 = vpow.pop %v795
    %797 = vadd.xlane.f32.xlu0 %v794
    %v798 = vpop.xlane.xlu0 %797
    %799 = vadd.xlane.f32.xlu0 %v796
    %v800 = vpop.xlane.xlu0 %799
    %v801 = vrcp.pop %v798
    %v802 = vmul.f32 %v798, %v801
    %v803 = vsub.f32 1.0, %v802
    %v804 = vmul.f32 %v801, %v803
    %v805 = vadd.f32 %v801, %v804
    %vm806 = vweird.f32 %v798
    %vm807 = vweird.f32 %v801
    %vm808 = vmor %vm806, %vm807
    %v809 = vsel %vm808, %v801, %v805
    %v810 = vand.u32 2147483647, %v798
    %vm811 = vcmp.eq.f32.partialorder %v810, 8.507059e+37
    %v812 = vand.u32 %v798, 2147483648
    %v813 = vor.u32 1.1754944e-38, %v812
    %v814 = vsel %vm811, %v813, %v809
    %v815 = vmul.f32 %v794, %v814
    %v816 = vrcp.pop %v800
    %v817 = vmul.f32 %v800, %v816
    %v818 = vsub.f32 1.0, %v817
    %v819 = vmul.f32 %v816, %v818
    %v820 = vadd.f32 %v816, %v819
    %vm821 = vweird.f32 %v800
    %vm822 = vweird.f32 %v816
    %vm823 = vmor %vm821, %vm822
    %v824 = vsel %vm823, %v816, %v820
    %v825 = vand.u32 2147483647, %v800
    %vm826 = vcmp.eq.f32.partialorder %v825, 8.507059e+37
    %v827 = vand.u32 %v800, 2147483648
    %v828 = vor.u32 1.1754944e-38, %v827
    %v829 = vsel %vm826, %v828, %v824
    %v830 = vmul.f32 %v796, %v829
    %s831 = scalar_lea.vmem [#allocation6], 32
    %832 = vst [vmem:[%s831] sm:$0xff] %v780
    %833 = vst [vmem:[%s831 + $0x8] sm:$0xff] %v783
    %s834 = scalar_lea.vmem [#allocation4], 32
    %835 = vst [vmem:[%s834] sm:$0xff] %v815
    %836 = vst [vmem:[%s834 + $0x8] sm:$0xff] %v830
    %837 = vmatpush.msra.mxu0 %v186
    %838 = vmatpush.msra.mxu0 %v183
    %839 = vmatpush.msra.mxu0 %v180
    %840 = vmatpush.msra.mxu0 %v177
    %841 = vmatpush.msra.mxu0 %v174
    %842 = vmatpush.msra.mxu0 %v171
    %843 = vmatpush.msra.mxu0 %v168
    %844 = vmatpush.msra.mxu0 %v165
    %845 = vmatpush.msra.mxu0 %v162
    %846 = vmatpush.msra.mxu0 %v159
    %847 = vmatpush.msra.mxu0 %v156
    %848 = vmatpush.msra.mxu0 %v153
    %849 = vmatpush.msra.mxu0 %v150
    %850 = vmatpush.msra.mxu0 %v147
    %851 = vmatpush.msra.mxu0 %v144
    %852 = vmatpush.msra.mxu0 %v141
    %853 = vmatmul.f32.gmra.mxu0 %v815
    %v854 = vpop.f32.mrf.mxu0
    %v855 = vadd.f32 0.0, %v854
    %856 = vmatmul.f32.gmra.mxu0 %v830
    %v857 = vpop.f32.mrf.mxu0
    %v858 = vadd.f32 0.0, %v857
    %859 = vdwg.mxu0
    %s860 = scalar_lea.vmem %s5, 256
    %v861 = vld [vmem:[%s860] sm:$0xff]
    %v862 = vld [vmem:[%s860 + $0x8] sm:$0xff]
    %v863 = vld [vmem:[%s860 + $0x10] sm:$0xff]
    %v864 = vld [vmem:[%s860 + $0x18] sm:$0xff]
    %v865 = vld [vmem:[%s860 + $0x20] sm:$0xff]
    %v866 = vld [vmem:[%s860 + $0x28] sm:$0xff]
    %v867 = vld [vmem:[%s860 + $0x30] sm:$0xff]
    %v868 = vld [vmem:[%s860 + $0x38] sm:$0xff]
    %v869 = vld [vmem:[%s860 + $0x40] sm:$0xff]
    %v870 = vld [vmem:[%s860 + $0x48] sm:$0xff]
    %v871 = vld [vmem:[%s860 + $0x50] sm:$0xff]
    %v872 = vld [vmem:[%s860 + $0x58] sm:$0xff]
    %v873 = vld [vmem:[%s860 + $0x60] sm:$0xff]
    %v874 = vld [vmem:[%s860 + $0x68] sm:$0xff]
    %v875 = vld [vmem:[%s860 + $0x70] sm:$0xff]
    %v876 = vld [vmem:[%s860 + $0x78] sm:$0xff]
    %s877 = scalar_lea.vmem %s3, 96
    %v878 = vld [vmem:[%s877] sm:$0xff]
    %v879 = vld [vmem:[%s877 + $0x8] sm:$0xff]
    %v880 = vld [vmem:[%s877 + $0x10] sm:$0xff]
    %v881 = vld [vmem:[%s877 + $0x18] sm:$0xff]
    %882 = vmatpush.msra.mxu0 0.0
    %883 = vmatpush.msra.mxu0 0.0
    %884 = vmatpush.msra.mxu0 0.0
    %885 = vmatpush.msra.mxu0 0.0
    %886 = vmatpush.msra.mxu0 0.0
    %887 = vmatpush.msra.mxu0 0.0
    %888 = vmatpush.msra.mxu0 0.0
    %889 = vmatpush.msra.mxu0 0.0
    %890 = vmatpush.msra.mxu0 0.0
    %891 = vmatpush.msra.mxu0 0.0
    %892 = vmatpush.msra.mxu0 0.0
    %893 = vmatpush.msra.mxu0 0.0
    %894 = vmatpush.msra.mxu0 %v881
    %895 = vmatpush.msra.mxu0 %v880
    %896 = vmatpush.msra.mxu0 %v879
    %897 = vmatpush.msra.mxu0 %v878
    %898 = vmatmul.f32.gmra.mxu0 %v734
    %v899 = vpop.f32.mrf.mxu0
    %v900 = vadd.f32 0.0, %v899
    %901 = vmatmul.f32.gmra.mxu0 %v737
    %v902 = vpop.f32.mrf.mxu0
    %v903 = vadd.f32 0.0, %v902
    %904 = vdwg.mxu0
    %905 = vmatpush.xpose.msra.mxu0 %v186
    %906 = vmatpush.xpose.msra.mxu0 %v183
    %907 = vmatpush.xpose.msra.mxu0 %v180
    %908 = vmatpush.xpose.msra.mxu0 %v177
    %909 = vmatpush.xpose.msra.mxu0 %v174
    %910 = vmatpush.xpose.msra.mxu0 %v171
    %911 = vmatpush.xpose.msra.mxu0 %v168
    %912 = vmatpush.xpose.msra.mxu0 %v165
    %913 = vmatpush.xpose.msra.mxu0 %v162
    %914 = vmatpush.xpose.msra.mxu0 %v159
    %915 = vmatpush.xpose.msra.mxu0 %v156
    %916 = vmatpush.xpose.msra.mxu0 %v153
    %917 = vmatpush.xpose.msra.mxu0 %v150
    %918 = vmatpush.xpose.msra.mxu0 %v147
    %919 = vmatpush.xpose.msra.mxu0 %v144
    %920 = vmatpush.xpose.msra.mxu0 %v141
    %921 = vmatmul.f32.gmra.mxu0 %v900
    %v922 = vpop.f32.mrf.mxu0
    %v923 = vadd.f32 0.0, %v922
    %924 = vmatmul.f32.gmra.mxu0 %v903
    %v925 = vpop.f32.mrf.mxu0
    %v926 = vadd.f32 0.0, %v925
    %927 = vdwg.mxu0
    %v928 = vadd.f32 %v923, %v188
    %v929 = vadd.f32 %v926, %v189
    %930 = vmax.xlane.f32.xlu0 %v928
    %v931 = vpop.xlane.xlu0 %930
    %932 = vmax.xlane.f32.xlu0 %v929
    %v933 = vpop.xlane.xlu0 %932
    %v934 = vsub.f32 %v928, %v931
    %v935 = vsub.f32 %v929, %v933
    %v936 = vmul.f32 %v934, 1.442695
    %v937 = vpow.pop %v936
    %v938 = vmul.f32 %v935, 1.442695
    %v939 = vpow.pop %v938
    %940 = vadd.xlane.f32.xlu0 %v937
    %v941 = vpop.xlane.xlu0 %940
    %942 = vadd.xlane.f32.xlu0 %v939
    %v943 = vpop.xlane.xlu0 %942
    %v944 = vrcp.pop %v941
    %v945 = vmul.f32 %v941, %v944
    %v946 = vsub.f32 1.0, %v945
    %v947 = vmul.f32 %v944, %v946
    %v948 = vadd.f32 %v944, %v947
    %vm949 = vweird.f32 %v941
    %vm950 = vweird.f32 %v944
    %vm951 = vmor %vm949, %vm950
    %v952 = vsel %vm951, %v944, %v948
    %v953 = vand.u32 2147483647, %v941
    %vm954 = vcmp.eq.f32.partialorder %v953, 8.507059e+37
    %v955 = vand.u32 %v941, 2147483648
    %v956 = vor.u32 1.1754944e-38, %v955
    %v957 = vsel %vm954, %v956, %v952
    %v958 = vmul.f32 %v937, %v957
    %v959 = vrcp.pop %v943
    %v960 = vmul.f32 %v943, %v959
    %v961 = vsub.f32 1.0, %v960
    %v962 = vmul.f32 %v959, %v961
    %v963 = vadd.f32 %v959, %v962
    %vm964 = vweird.f32 %v943
    %vm965 = vweird.f32 %v959
    %vm966 = vmor %vm964, %vm965
    %v967 = vsel %vm966, %v959, %v963
    %v968 = vand.u32 2147483647, %v943
    %vm969 = vcmp.eq.f32.partialorder %v968, 8.507059e+37
    %v970 = vand.u32 %v943, 2147483648
    %v971 = vor.u32 1.1754944e-38, %v970
    %v972 = vsel %vm969, %v971, %v967
    %v973 = vmul.f32 %v939, %v972
    %s974 = scalar_lea.vmem [#allocation6], 48
    %975 = vst [vmem:[%s974] sm:$0xff] %v923
    %976 = vst [vmem:[%s974 + $0x8] sm:$0xff] %v926
    %s977 = scalar_lea.vmem [#allocation4], 48
    %978 = vst [vmem:[%s977] sm:$0xff] %v958
    %979 = vst [vmem:[%s977 + $0x8] sm:$0xff] %v973
    %980 = vmatpush.msra.mxu0 %v186
    %981 = vmatpush.msra.mxu0 %v183
    %982 = vmatpush.msra.mxu0 %v180
    %983 = vmatpush.msra.mxu0 %v177
    %984 = vmatpush.msra.mxu0 %v174
    %985 = vmatpush.msra.mxu0 %v171
    %986 = vmatpush.msra.mxu0 %v168
    %987 = vmatpush.msra.mxu0 %v165
    %988 = vmatpush.msra.mxu0 %v162
    %989 = vmatpush.msra.mxu0 %v159
    %990 = vmatpush.msra.mxu0 %v156
    %991 = vmatpush.msra.mxu0 %v153
    %992 = vmatpush.msra.mxu0 %v150
    %993 = vmatpush.msra.mxu0 %v147
    %994 = vmatpush.msra.mxu0 %v144
    %995 = vmatpush.msra.mxu0 %v141
    %996 = vmatmul.f32.gmra.mxu0 %v958
    %v997 = vpop.f32.mrf.mxu0
    %v998 = vadd.f32 0.0, %v997
    %999 = vmatmul.f32.gmra.mxu0 %v973
    %v1000 = vpop.f32.mrf.mxu0
    %v1001 = vadd.f32 0.0, %v1000
    %1002 = vdwg.mxu0
    %s1003 = scalar_lea.vmem %s5, 384
    %v1004 = vld [vmem:[%s1003] sm:$0xff]
    %v1005 = vld [vmem:[%s1003 + $0x8] sm:$0xff]
    %v1006 = vld [vmem:[%s1003 + $0x10] sm:$0xff]
    %v1007 = vld [vmem:[%s1003 + $0x18] sm:$0xff]
    %v1008 = vld [vmem:[%s1003 + $0x20] sm:$0xff]
    %v1009 = vld [vmem:[%s1003 + $0x28] sm:$0xff]
    %v1010 = vld [vmem:[%s1003 + $0x30] sm:$0xff]
    %v1011 = vld [vmem:[%s1003 + $0x38] sm:$0xff]
    %v1012 = vld [vmem:[%s1003 + $0x40] sm:$0xff]
    %v1013 = vld [vmem:[%s1003 + $0x48] sm:$0xff]
    %v1014 = vld [vmem:[%s1003 + $0x50] sm:$0xff]
    %v1015 = vld [vmem:[%s1003 + $0x58] sm:$0xff]
    %v1016 = vld [vmem:[%s1003 + $0x60] sm:$0xff]
    %v1017 = vld [vmem:[%s1003 + $0x68] sm:$0xff]
    %v1018 = vld [vmem:[%s1003 + $0x70] sm:$0xff]
    %v1019 = vld [vmem:[%s1003 + $0x78] sm:$0xff]
    %1020 = vmatpush.msra.mxu0 %v1019
    %1021 = vmatpush.msra.mxu0 %v1018
    %1022 = vmatpush.msra.mxu0 %v1017
    %1023 = vmatpush.msra.mxu0 %v1016
    %1024 = vmatpush.msra.mxu0 %v1015
    %1025 = vmatpush.msra.mxu0 %v1014
    %1026 = vmatpush.msra.mxu0 %v1013
    %1027 = vmatpush.msra.mxu0 %v1012
    %1028 = vmatpush.msra.mxu0 %v1011
    %1029 = vmatpush.msra.mxu0 %v1010
    %1030 = vmatpush.msra.mxu0 %v1009
    %1031 = vmatpush.msra.mxu0 %v1008
    %1032 = vmatpush.msra.mxu0 %v1007
    %1033 = vmatpush.msra.mxu0 %v1006
    %1034 = vmatpush.msra.mxu0 %v1005
    %1035 = vmatpush.msra.mxu0 %v1004
    %1036 = vmatmul.f32.gmra.mxu0 %v998
    %v1037 = vpop.f32.mrf.mxu0
    %v1038 = vadd.f32 0.0, %v1037
    %1039 = vmatmul.f32.gmra.mxu0 %v1001
    %v1040 = vpop.f32.mrf.mxu0
    %v1041 = vadd.f32 0.0, %v1040
    %1042 = vdwg.mxu0
    %1043 = vmatpush.msra.mxu0 %v876
    %1044 = vmatpush.msra.mxu0 %v875
    %1045 = vmatpush.msra.mxu0 %v874
    %1046 = vmatpush.msra.mxu0 %v873
    %1047 = vmatpush.msra.mxu0 %v872
    %1048 = vmatpush.msra.mxu0 %v871
    %1049 = vmatpush.msra.mxu0 %v870
    %1050 = vmatpush.msra.mxu0 %v869
    %1051 = vmatpush.msra.mxu0 %v868
    %1052 = vmatpush.msra.mxu0 %v867
    %1053 = vmatpush.msra.mxu0 %v866
    %1054 = vmatpush.msra.mxu0 %v865
    %1055 = vmatpush.msra.mxu0 %v864
    %1056 = vmatpush.msra.mxu0 %v863
    %1057 = vmatpush.msra.mxu0 %v862
    %1058 = vmatpush.msra.mxu0 %v861
    %1059 = vmatmul.f32.gmra.mxu0 %v855
    %v1060 = vpop.f32.mrf.mxu0
    %v1061 = vadd.f32 %v1038, %v1060
    %1062 = vmatmul.f32.gmra.mxu0 %v858
    %v1063 = vpop.f32.mrf.mxu0
    %v1064 = vadd.f32 %v1041, %v1063
    %1065 = vdwg.mxu0
    %v1066 = vadd.f32 %v1061, %v726
    %v1067 = vadd.f32 %v1064, %v727
    %s1068 = scalar_lea.vmem %s6, 1
    %v1069 = vld [vmem:[%s1068] sm:$0x1]
    %s1070 = scalar_lea.vmem %s7, 1
    %v1071 = vld [vmem:[%s1070] sm:$0x1]
    %v1072 = vsel %vm74, %v1066, 0.0
    %1073 = vadd.xlane.f32.xlu0 %v1072
    %v1074 = vpop.xlane.xlu0 %1073
    %v1075 = vsel %vm74, %v1067, 0.0
    %1076 = vadd.xlane.f32.xlu0 %v1075
    %v1077 = vpop.xlane.xlu0 %1076
    %v1078 = vmul.f32 %v1074, %v540
    %v1079 = vmul.f32 %v1077, %v540
    %v1080 = vsub.f32 %v1066, %v1078
    %v1081 = vsub.f32 %v1067, %v1079
    %v1082 = vmul.f32 %v1080, %v1080
    %v1083 = vmul.f32 %v1081, %v1081
    %v1084 = vsel %vm74, %v1082, 0.0
    %1085 = vadd.xlane.f32.xlu0 %v1084
    %v1086 = vpop.xlane.xlu0 %1085
    %v1087 = vsel %vm74, %v1083, 0.0
    %1088 = vadd.xlane.f32.xlu0 %v1087
    %v1089 = vpop.xlane.xlu0 %1088
    %v1090 = vmul.f32 %v1086, %v540
    %v1091 = vmul.f32 %v1089, %v540
    %v1092 = vadd.f32 %v1090, 1e-06
    %v1093 = vadd.f32 %v1091, 1e-06
    %v1094 = vrsqrt.pop %v1092
    %v1095 = vmul.f32 %v1094, %v1092
    %v1096 = vmul.f32 %v1095, %v1094
    %v1097 = vmul.f32 0.5, %v1096
    %v1098 = vsub.f32 1.5, %v1097
    %v1099 = vmul.f32 %v1094, %v1098
    %vm1100 = vweird.f32 %v1092
    %vm1101 = vweird.f32 %v1094
    %vm1102 = vmor %vm1100, %vm1101
    %v1103 = vsel %vm1102, %v1094, %v1099
    %v1104 = vrsqrt.pop %v1093
    %v1105 = vmul.f32 %v1104, %v1093
    %v1106 = vmul.f32 %v1105, %v1104
    %v1107 = vmul.f32 0.5, %v1106
    %v1108 = vsub.f32 1.5, %v1107
    %v1109 = vmul.f32 %v1104, %v1108
    %vm1110 = vweird.f32 %v1093
    %vm1111 = vweird.f32 %v1104
    %vm1112 = vmor %vm1110, %vm1111
    %v1113 = vsel %vm1112, %v1104, %v1109
    %v1114 = vmul.f32 %v1080, %v1103
    %v1115 = vmul.f32 %v1081, %v1113
    %v1117 = vperm.slane %v1069, 0
    %v1119 = vmul.f32 %v1114, %v1117
    %v1120 = vmul.f32 %v1115, %v1117
    %v1122 = vperm.slane %v1071, 0
    %v1124 = vadd.f32 %v1119, %v1122
    %v1125 = vadd.f32 %v1120, %v1122
    %s1126 = scalar_lea.vmem %s8, 32
    %v1127 = vld [vmem:[%s1126] sm:$0xff]
    %v1128 = vld [vmem:[%s1126 + $0x8] sm:$0xff]
    %v1129 = vld [vmem:[%s1126 + $0x10] sm:$0xff]
    %v1130 = vld [vmem:[%s1126 + $0x18] sm:$0xff]
    %s1131 = scalar_lea.vmem %s9, 1
    %v1132 = vld [vmem:[%s1131] sm:$0x1]
    %v1134 = vperm.slane %v1132, 0
    %v1137 = vsel %vm74, %v1124, 0
    %v1140 = vsel %vm74, %v1125, 0
    %1142 = vmatpush.msra.mxu0 0.0
    %1143 = vmatpush.msra.mxu0 0.0
    %1144 = vmatpush.msra.mxu0 0.0
    %1145 = vmatpush.msra.mxu0 0.0
    %1146 = vmatpush.msra.mxu0 0.0
    %1147 = vmatpush.msra.mxu0 0.0
    %1148 = vmatpush.msra.mxu0 0.0
    %1149 = vmatpush.msra.mxu0 0.0
    %1150 = vmatpush.msra.mxu0 0.0
    %1151 = vmatpush.msra.mxu0 0.0
    %1152 = vmatpush.msra.mxu0 0.0
    %1153 = vmatpush.msra.mxu0 0.0
    %1154 = vmatpush.msra.mxu0 %v1130
    %1155 = vmatpush.msra.mxu0 %v1129
    %1156 = vmatpush.msra.mxu0 %v1128
    %1157 = vmatpush.msra.mxu0 %v1127
    %1158 = vmatmul.f32.gmra.mxu0 %v1137
    %v1159 = vpop.f32.mrf.mxu0
    %v1160 = vadd.f32 %v1134, %v1159
    %1161 = vmatmul.f32.gmra.mxu0 %v1140
    %v1162 = vpop.f32.mrf.mxu0
    %v1163 = vadd.f32 %v1134, %v1162
    %1164 = vdwg.mxu0
    %v1165 = vmax.f32 %v1160, 0.0
    %v1166 = vmax.f32 %v1163, 0.0
    %s1167 = scalar_lea.vmem %s10, 64
    %v1168 = vld [vmem:[%s1167] sm:$0xff]
    %v1169 = vld [vmem:[%s1167 + $0x8] sm:$0xff]
    %v1170 = vld [vmem:[%s1167 + $0x10] sm:$0xff]
    %v1171 = vld [vmem:[%s1167 + $0x18] sm:$0xff]
    %v1172 = vld [vmem:[%s1167 + $0x20] sm:$0xff]
    %v1173 = vld [vmem:[%s1167 + $0x28] sm:$0xff]
    %v1174 = vld [vmem:[%s1167 + $0x30] sm:$0xff]
    %v1175 = vld [vmem:[%s1167 + $0x38] sm:$0xff]
    %s1176 = scalar_lea.vmem %s11, 1
    %v1177 = vld [vmem:[%s1176] sm:$0x1]
    %v1179 = vperm.slane %v1177, 0
    %v1182 = vsel %vm640, %v1165, 0
    %v1185 = vsel %vm640, %v1166, 0
    %1187 = vmatpush.msra.mxu0 0.0
    %1188 = vmatpush.msra.mxu0 0.0
    %1189 = vmatpush.msra.mxu0 0.0
    %1190 = vmatpush.msra.mxu0 0.0
    %1191 = vmatpush.msra.mxu0 0.0
    %1192 = vmatpush.msra.mxu0 0.0
    %1193 = vmatpush.msra.mxu0 0.0
    %1194 = vmatpush.msra.mxu0 0.0
    %1195 = vmatpush.msra.mxu0 %v1175
    %1196 = vmatpush.msra.mxu0 %v1174
    %1197 = vmatpush.msra.mxu0 %v1173
    %1198 = vmatpush.msra.mxu0 %v1172
    %1199 = vmatpush.msra.mxu0 %v1171
    %1200 = vmatpush.msra.mxu0 %v1170
    %1201 = vmatpush.msra.mxu0 %v1169
    %1202 = vmatpush.msra.mxu0 %v1168
    %1203 = vmatmul.f32.gmra.mxu0 %v1182
    %v1204 = vpop.f32.mrf.mxu0
    %v1205 = vadd.f32 %v1179, %v1204
    %1206 = vmatmul.f32.gmra.mxu0 %v1185
    %v1207 = vpop.f32.mrf.mxu0
    %v1208 = vadd.f32 %v1179, %v1207
    %1209 = vdwg.mxu0
    %v1210 = vadd.f32 %v1205, %v1124
    %v1211 = vadd.f32 %v1208, %v1125
    %s1212 = scalar_lea.vmem %s12, 1
    %v1213 = vld [vmem:[%s1212] sm:$0x1]
    %s1214 = scalar_lea.vmem %s13, 1
    %v1215 = vld [vmem:[%s1214] sm:$0x1]
    %v1216 = vsel %vm74, %v1210, 0.0
    %1217 = vadd.xlane.f32.xlu0 %v1216
    %v1218 = vpop.xlane.xlu0 %1217
    %v1219 = vsel %vm74, %v1211, 0.0
    %1220 = vadd.xlane.f32.xlu0 %v1219
    %v1221 = vpop.xlane.xlu0 %1220
    %v1222 = vmul.f32 %v1218, %v540
    %v1223 = vmul.f32 %v1221, %v540
    %v1224 = vsub.f32 %v1210, %v1222
    %v1225 = vsub.f32 %v1211, %v1223
    %v1226 = vmul.f32 %v1224, %v1224
    %v1227 = vmul.f32 %v1225, %v1225
    %v1228 = vsel %vm74, %v1226, 0.0
    %1229 = vadd.xlane.f32.xlu0 %v1228
    %v1230 = vpop.xlane.xlu0 %1229
    %v1231 = vsel %vm74, %v1227, 0.0
    %1232 = vadd.xlane.f32.xlu0 %v1231
    %v1233 = vpop.xlane.xlu0 %1232
    %v1234 = vmul.f32 %v1230, %v540
    %v1235 = vmul.f32 %v1233, %v540
    %v1236 = vadd.f32 %v1234, 1e-06
    %v1237 = vadd.f32 %v1235, 1e-06
    %v1238 = vrsqrt.pop %v1236
    %v1239 = vmul.f32 %v1238, %v1236
    %v1240 = vmul.f32 %v1239, %v1238
    %v1241 = vmul.f32 0.5, %v1240
    %v1242 = vsub.f32 1.5, %v1241
    %v1243 = vmul.f32 %v1238, %v1242
    %vm1244 = vweird.f32 %v1236
    %vm1245 = vweird.f32 %v1238
    %vm1246 = vmor %vm1244, %vm1245
    %v1247 = vsel %vm1246, %v1238, %v1243
    %v1248 = vrsqrt.pop %v1237
    %v1249 = vmul.f32 %v1248, %v1237
    %v1250 = vmul.f32 %v1249, %v1248
    %v1251 = vmul.f32 0.5, %v1250
    %v1252 = vsub.f32 1.5, %v1251
    %v1253 = vmul.f32 %v1248, %v1252
    %vm1254 = vweird.f32 %v1237
    %vm1255 = vweird.f32 %v1248
    %vm1256 = vmor %vm1254, %vm1255
    %v1257 = vsel %vm1256, %v1248, %v1253
    %v1258 = vmul.f32 %v1224, %v1247
    %v1259 = vmul.f32 %v1225, %v1257
    %v1261 = vperm.slane %v1213, 0
    %v1263 = vmul.f32 %v1258, %v1261
    %v1264 = vmul.f32 %v1259, %v1261
    %v1266 = vperm.slane %v1215, 0
    %v1268 = vadd.f32 %v1263, %v1266
    %v1269 = vadd.f32 %v1264, %v1266
    %1270 = vst.msk [vmem:[#allocation2] sm:$0xff] %vm74, %v1268
    %1271 = vst.msk [vmem:[#allocation2 + $0x8] sm:$0xff] %vm74, %v1269
    // Predicated region
    $region58: #{tpu_custom_call.1} parent=1 // pred_check
      _
    $region59: #{tpu_custom_call.1} parent=1 // pred_check_branch
      %1273 = sbr.rel (0) target = $region61
    $region60: #{tpu_custom_call.1} parent=1 // pred_region
      %1275 = vsyncadd [#allocation3], 0
      %s1276 = sshll.u32 [#allocation2], 4
      %s1277 = int_to_ptr.vmem [resolvable:$true] %s1276
      %s1278 = sshll.u32 %s14, 4
      %s1279 = int_to_ptr.hbm [resolvable:$true] %s1278
      %1284 = dma.vmem_to_hbm [thread:$0]  %s1277, 256, %s1279, [#allocation3], 128, 128, 8
    $region61: #{tpu_custom_call.1} parent=1 // pred_fallthru
      _
    // Predicated region
    $region62: #{tpu_custom_call.1} parent=1 // pred_check
      _
    $region63: #{tpu_custom_call.1} parent=1 // pred_check_branch
      %1286 = sbr.rel (0) target = $region65
    $region64: #{tpu_custom_call.1} parent=1 // pred_region
      %1288 = vsyncadd [#allocation5], 0
      %s1289 = sshll.u32 [#allocation4], 4
      %s1290 = int_to_ptr.vmem [resolvable:$true] %s1289
      %s1291 = sshll.u32 %s15, 4
      %s1292 = int_to_ptr.hbm [resolvable:$true] %s1291
      %1297 = dma.vmem_to_hbm [thread:$0]  %s1290, 1024, %s1292, [#allocation5], 128, 128, 8
    $region65: #{tpu_custom_call.1} parent=1 // pred_fallthru
      _
    // Predicated region
    $region66: #{tpu_custom_call.1} parent=1 // pred_check
      _
    $region67: #{tpu_custom_call.1} parent=1 // pred_check_branch
      %1299 = sbr.rel (0) target = $region69
    $region68: #{tpu_custom_call.1} parent=1 // pred_region
      %1301 = vsyncadd [#allocation5], 0
      %s1302 = sshll.u32 [#allocation6], 4
      %s1303 = int_to_ptr.vmem [resolvable:$true] %s1302
      %s1304 = sshll.u32 %s16, 4
      %s1305 = int_to_ptr.hbm [resolvable:$true] %s1304
      %1310 = dma.vmem_to_hbm [thread:$0]  %s1303, 1024, %s1305, [#allocation5], 128, 128, 8
    $region69: #{tpu_custom_call.1} parent=1 // pred_fallthru
      _
    // Predicated region
    $region70: #{tpu_custom_call.1} parent=1 // pred_check
      _
    $region71: #{tpu_custom_call.1} parent=1 // pred_check_branch
      %1312 = sbr.rel (0) target = $region73
    $region72: #{tpu_custom_call.1} parent=1 // pred_region
      %1314 = dma.done [#allocation3], 256
    $region73: #{tpu_custom_call.1} parent=1 // pred_fallthru
      _
    // Predicated region
    $region74: #{tpu_custom_call.1} parent=1 // pred_check
      _
    $region75: #{tpu_custom_call.1} parent=1 // pred_check_branch
      %1316 = sbr.rel (0) target = $region77
    $region76: #{tpu_custom_call.1} parent=1 // pred_region
      %1318 = dma.done [#allocation5], 1024
    $region77: #{tpu_custom_call.1} parent=1 // pred_fallthru
      _
    // Predicated region
    $region78: #{tpu_custom_call.1} parent=1 // pred_check
      _
    $region79: #{tpu_custom_call.1} parent=1 // pred_check_branch
      %1320 = sbr.rel (0) target = $region81
    $region80: #{tpu_custom_call.1} parent=1 // pred_region
      %1322 = dma.done [#allocation5], 1024
    $region81: #{tpu_custom_call.1} parent=1 // pred_fallthru
      _
    %1323 = vsyncpa [#allocation3], 1
    %1324 = vsyncpa [#allocation5], 1

</llo_original>
